<compile_context>
chip_gen: v6e
topology: v6e:2x2x1
jax: 0.10.0
libtpu: 0.0.40
codegen_flags: <defaults>
</compile_context>

<pallas_src>
import functools

import numpy as np
import jax
import jax.numpy as jnp
from jax import lax
from jax.experimental import pallas as pl
from jax.experimental.pallas import tpu as pltpu


# ----------------------------------------------------------------- chip helpers
@functools.lru_cache(maxsize=None)
def _vmem_limit_bytes():
    """Chip-aware scoped-VMEM limit: ~3/4 of physical, clamped to [32, 96] MiB."""
    try:
        cap = int(pltpu.get_tpu_info().vmem_capacity_bytes)
    except Exception:
        cap = 64 * 1024 * 1024
    return max(32 * 1024 * 1024, min(96 * 1024 * 1024, (cap * 3) // 4))


def _bf16(params, name):
    """Use the pre-cast bf16 weight if present (prepare_params), else cast."""
    return params.get(name + "_bf16", params[name].astype(jnp.bfloat16))


def prepare_params(params):
    """Pre-cast MXU weight matrices to bf16 once (avoids per-call cast traffic)."""
    p = dict(params)
    for name in ("qkv_w", "proj_w", "fc1_w", "fc2_w"):
        p[name + "_bf16"] = params[name].astype(jnp.bfloat16)
    return p


def _choose_token_tile(T, C, hidden, vmem_limit):
    """MLP rows per grid step. Single step when it fits comfortably (grid is a
    serial loop on 1-TC chips); otherwise the largest divisor under budget."""
    weight_bytes = 2 * 2 * 2 * C * hidden              # fc1+fc2 bf16, double-buffered
    per_row = 4 * (4 * C + 2 * hidden)                  # f32 activations per token
    budget = max(vmem_limit // 2 - weight_bytes, 64 * per_row)
    max_rows = max(64, budget // per_row)
    if T <= min(max_rows, 1024):
        return T
    for t in (2048, 1024, 512, 256, 128, 64, 32, 16, 8):
        if t <= max_rows and T % t == 0:
            return t
    return T


# -------------------------------------------------- plain-JAX glue (reference)
def window_partition_jnp(x, ws):
    B, H, W, C = x.shape
    x = x.reshape(B, H // ws, ws, W // ws, ws, C)
    return jnp.transpose(x, (0, 1, 3, 2, 4, 5)).reshape(-1, ws, ws, C)


def window_reverse_jnp(windows, ws, H, W):
    B = windows.shape[0] // ((H * W) // (ws * ws))
    x = windows.reshape(B, H // ws, W // ws, ws, ws, -1)
    return jnp.transpose(x, (0, 1, 3, 2, 4, 5)).reshape(B, H, W, -1)


def calculate_mask_np(H, W, ws, ss):
    """Replicates SwinTransformerBlock.calculate_mask (returns (nW, N, N) float32)."""
    img_mask = np.zeros((1, H, W, 1), dtype=np.float32)
    h_slices = (slice(0, -ws), slice(-ws, -ss), slice(-ss, None))
    w_slices = (slice(0, -ws), slice(-ws, -ss), slice(-ss, None))
    cnt = 0
    for h in h_slices:
        for w in w_slices:
            img_mask[:, h, w, :] = cnt
            cnt += 1
    m = img_mask.reshape(1, H // ws, ws, W // ws, ws, 1)
    m = m.transpose(0, 1, 3, 2, 4, 5).reshape(-1, ws * ws)
    attn_mask = m[:, None, :] - m[:, :, None]
    attn_mask = np.where(attn_mask != 0, -100.0, 0.0).astype(np.float32)
    return jnp.asarray(attn_mask)


def relative_position_bias(table, ws, num_heads):
    """table: ((2*ws-1)**2, num_heads) -> bias (num_heads, N, N), N = ws*ws."""
    coords = np.stack(np.meshgrid(np.arange(ws), np.arange(ws), indexing="ij"))
    coords_flat = coords.reshape(2, -1)
    rel = coords_flat[:, :, None] - coords_flat[:, None, :]
    rel = rel.transpose(1, 2, 0).astype(np.int64)
    rel[:, :, 0] += ws - 1
    rel[:, :, 1] += ws - 1
    rel[:, :, 0] *= 2 * ws - 1
    idx = rel.sum(-1)  # (N, N)
    bias = table[idx.reshape(-1)].reshape(ws * ws, ws * ws, num_heads)
    return jnp.transpose(bias, (2, 0, 1)).astype(jnp.float32)


# ------------------------------------------------------------------------ kernels
def window_attn_kernel(x_ref, bias_ref, g1_ref, b1_ref,
                       qkvw_ref, qkvb_ref, pw_ref, pb_ref, *rest,
                       num_heads, head_dim, scale, eps, ws, has_mask):
    """One row of windows per grid step:
       in-kernel window partition -> LN1 -> fused QKV -> head+window batched
       attention -> proj -> fused residual -> in-kernel window reverse."""
    if has_mask:
        mask_ref, o_ref = rest
    else:
        (o_ref,) = rest

    _, _, W, C = x_ref.shape
    k = W // ws                    # windows in this row
    N = ws * ws
    T = k * N

    # --- window partition (VMEM-resident, no HBM round trip) ---
    xrow = x_ref[...].reshape(ws, W, C)
    wins = [xrow[:, j * ws:(j + 1) * ws, :].reshape(1, N, C) for j in range(k)]
    xw = jnp.concatenate(wins, axis=0)                 # (k, N, C), window-major
    xt = xw.reshape(T, C)                              # pre-LN shortcut (f32)

    # --- LayerNorm1 (f32 statistics) ---
    mu = jnp.mean(xt, axis=-1, keepdims=True)
    var = jnp.mean(jnp.square(xt - mu), axis=-1, keepdims=True)
    xn = (xt - mu) * lax.rsqrt(var + eps) * g1_ref[...] + b1_ref[...]

    # --- fused QKV projection (bf16 MXU operands, f32 accumulate) ---
    qkv = jnp.dot(xn.astype(jnp.bfloat16), qkvw_ref[...],
                  preferred_element_type=jnp.float32) + qkvb_ref[...]
    qkv = qkv.reshape(k, N, 3 * C)                     # columns = [q | k | v]

    # --- head+window batched attention (single einsum per stage) ---
    qs, ks, vs = [], [], []
    for h in range(num_heads):                         # static lane slices only
        lo = h * head_dim
        qs.append(qkv[:, :, lo:lo + head_dim])
        ks.append(qkv[:, :, C + lo:C + lo + head_dim])
        vs.append(qkv[:, :, 2 * C + lo:2 * C + lo + head_dim])
    q = jnp.stack(qs, axis=0).reshape(num_heads * k, N, head_dim)
    kt = jnp.stack(ks, axis=0).reshape(num_heads * k, N, head_dim)
    v = jnp.stack(vs, axis=0).reshape(num_heads * k, N, head_dim)

    q = q * scale                                      # scale folded into q (small tensor)

    s = jnp.einsum("bnd,bmd->bnm", q.astype(jnp.bfloat16), kt.astype(jnp.bfloat16),
                   preferred_element_type=jnp.float32)          # (nh*k, N, N) f32
    s = s.reshape(num_heads, k, N, N) + bias_ref[...][:, None]  # rel-pos bias
    if has_mask:
        s = s + mask_ref[...][None]                             # shift mask

    s = s - jnp.max(s, axis=-1, keepdims=True)
    p = jnp.exp(s)
    # EUP-slot approximate reciprocal (documented deviation, ~1e-3 rel error).
    p = p * pl.reciprocal(jnp.sum(p, axis=-1, keepdims=True), approx=True)
    p = p.reshape(num_heads * k, N, N)

    o = jnp.einsum("bnm,bmd->bnd", p.astype(jnp.bfloat16), v.astype(jnp.bfloat16),
                   preferred_element_type=jnp.float32)          # (nh*k, N, d)
    o = o.reshape(num_heads, k, N, head_dim)
    attn_out = jnp.concatenate(
        [o[h].reshape(T, head_dim) for h in range(num_heads)], axis=-1)   # (T, C)

    # --- output projection + fused residual (pre-LN shortcut) ---
    y = jnp.dot(attn_out.astype(jnp.bfloat16), pw_ref[...],
                preferred_element_type=jnp.float32) + pb_ref[...]
    y = y + xt

    # --- window reverse (VMEM-resident) + store ---
    # TODO(synk): lane-dense store for C<128 (pad C or flatten last dim to 128x).
    yw = y.reshape(k, N, C)
    cols = [yw[j].reshape(ws, ws, C) for j in range(k)]
    o_ref[...] = jnp.concatenate(cols, axis=1).reshape(1, ws, W, C)


def mlp_kernel(x_ref, g2_ref, b2_ref, w1_ref, bb1_ref, w2_ref, bb2_ref, o_ref, *, eps):
    x = x_ref[...]                                     # (Tm, C) f32
    mu = jnp.mean(x, axis=-1, keepdims=True)
    var = jnp.mean(jnp.square(x - mu), axis=-1, keepdims=True)
    xn = (x - mu) * lax.rsqrt(var + eps) * g2_ref[...] + b2_ref[...]

    h = jnp.dot(xn.astype(jnp.bfloat16), w1_ref[...],
                preferred_element_type=jnp.float32) + bb1_ref[...]
    # exact GELU (matches nn.GELU default), kept in f32.
    # TODO(synk): optional tanh-approx GELU (EUP) behind an accuracy flag.
    h = 0.5 * h * (1.0 + lax.erf(h * np.float32(1.0 / np.sqrt(2.0))))
    y = jnp.dot(h.astype(jnp.bfloat16), w2_ref[...],
                preferred_element_type=jnp.float32) + bb2_ref[...]
    # TODO(synk): lane-dense store for C<128 configs.
    o_ref[...] = x + y                                 # residual add fused in


# ------------------------------------------------------------------------ wrappers
def window_attention_pallas(xv, rel_bias, params, num_heads, ws, attn_mask=None):
    """xv: (B, H, W, C) already cyclically shifted. Returns (B, H, W, C) =
    xv + proj(attn(LN1(window_partition(xv)))) window-reversed (residual fused)."""
    B, H, W, C = xv.shape
    N = ws * ws
    k = W // ws
    n_rows = H // ws
    head_dim = C // num_heads
    scale = head_dim ** -0.5
    has_mask = attn_mask is not None

    qkv_w = _bf16(params, "qkv_w")
    proj_w = _bf16(params, "proj_w")

    kernel = functools.partial(window_attn_kernel, num_heads=num_heads,
                               head_dim=head_dim, scale=scale, eps=1e-5,
                               ws=ws, has_mask=has_mask)

    in_specs = [
        pl.BlockSpec((1, ws, W, C), lambda b, i: (b, i, 0, 0)),       # row of windows
        pl.BlockSpec((num_heads, N, N), lambda b, i: (0, 0, 0)),      # rel-pos bias
        pl.BlockSpec((1, C), lambda b, i: (0, 0)),                    # LN1 gamma
        pl.BlockSpec((1, C), lambda b, i: (0, 0)),                    # LN1 beta
        # TODO(synk): pl.Buffered(1) on constant weight specs for v7x VMEM budget.
        pl.BlockSpec((C, 3 * C), lambda b, i: (0, 0)),                # qkv W (bf16)
        pl.BlockSpec((1, 3 * C), lambda b, i: (0, 0)),                # qkv b
        pl.BlockSpec((C, C), lambda b, i: (0, 0)),                    # proj W (bf16)
        pl.BlockSpec((1, C), lambda b, i: (0, 0)),                    # proj b
    ]
    args = [xv, rel_bias, params["g1"], params["b1"],
            qkv_w, params["qkv_b"], proj_w, params["proj_b"]]

    if has_mask:
        # (nW, N, N) mask: window-row i of any image uses rows [i*k, (i+1)*k).
        in_specs.append(pl.BlockSpec((k, N, N), lambda b, i: (i, 0, 0)))
        args.append(attn_mask)

    return pl.pallas_call(
        kernel,
        out_shape=jax.ShapeDtypeStruct((B, H, W, C), jnp.float32),
        grid=(B, n_rows),
        in_specs=in_specs,
        out_specs=pl.BlockSpec((1, ws, W, C), lambda b, i: (b, i, 0, 0)),
        compiler_params=pltpu.CompilerParams(
            dimension_semantics=("parallel", "parallel"),
            vmem_limit_bytes=_vmem_limit_bytes()),
    )(*args)


def mlp_pallas(tokens, params):
    T, C = tokens.shape
    hidden = params["fc1_w"].shape[1]
    vmem = _vmem_limit_bytes()
    tile = _choose_token_tile(T, C, hidden, vmem)
    assert T % tile == 0

    fc1_w = _bf16(params, "fc1_w")
    fc2_w = _bf16(params, "fc2_w")

    return pl.pallas_call(
        functools.partial(mlp_kernel, eps=1e-5),
        out_shape=jax.ShapeDtypeStruct((T, C), jnp.float32),
        grid=(T // tile,),
        in_specs=[
            pl.BlockSpec((tile, C), lambda i: (i, 0)),
            pl.BlockSpec((1, C), lambda i: (0, 0)),
            pl.BlockSpec((1, C), lambda i: (0, 0)),
            pl.BlockSpec((C, hidden), lambda i: (0, 0)),
            pl.BlockSpec((1, hidden), lambda i: (0, 0)),
            pl.BlockSpec((hidden, C), lambda i: (0, 0)),
            pl.BlockSpec((1, C), lambda i: (0, 0)),
        ],
        out_specs=pl.BlockSpec((tile, C), lambda i: (i, 0)),
        compiler_params=pltpu.CompilerParams(
            dimension_semantics=("parallel",),
            vmem_limit_bytes=vmem),
    )(tokens, params["g2"], params["b2"], fc1_w, params["fc1_b"],
      fc2_w, params["fc2_b"])


# --------------------------------------------------------------------- full forward
def swin_block_forward(x, x_size, params, cfg):
    H, W = x_size
    B, L, C = x.shape
    ws, ss, num_heads = cfg["window_size"], cfg["shift_size"], cfg["num_heads"]

    xv = x.reshape(B, H, W, C)
    if ss > 0:
        xv = jnp.roll(xv, shift=(-ss, -ss), axis=(1, 2))

    attn_mask = cfg["attn_mask"] if ss > 0 else None          # (nW, N, N) or None
    # LN1 + window partition + attention + proj + residual + window reverse,
    # all inside the kernel (residual commutes with roll/partition, drop_path=Id).
    y = window_attention_pallas(xv, params["rel_bias"], params, num_heads, ws,
                                attn_mask)
    if ss > 0:
        y = jnp.roll(y, shift=(ss, ss), axis=(1, 2))

    tokens = y.reshape(B * L, C)
    out = mlp_pallas(tokens, params)                          # LN2 + MLP + residual
    return out.reshape(B, L, C)


# ----------------------------------------------------------------- pure-JAX reference
def reference_forward(x, x_size, params, cfg):
    H, W = x_size
    B, L, C = x.shape
    ws, ss, nh = cfg["window_size"], cfg["shift_size"], cfg["num_heads"]
    hd = C // nh
    scale = hd ** -0.5
    N = ws * ws

    def ln(t, g, b):
        mu = jnp.mean(t, -1, keepdims=True)
        var = jnp.mean((t - mu) ** 2, -1, keepdims=True)
        return (t - mu) / jnp.sqrt(var + 1e-5) * g[0] + b[0]

    shortcut = x
    xn = ln(x, params["g1"], params["b1"]).reshape(B, H, W, C)
    if ss > 0:
        xn = jnp.roll(xn, (-ss, -ss), (1, 2))
    xw = window_partition_jnp(xn, ws).reshape(-1, N, C)
    nWtot = xw.shape[0]

    qkv = xw @ params["qkv_w"] + params["qkv_b"][0]
    qkv = qkv.reshape(nWtot, N, 3, nh, hd).transpose(2, 0, 3, 1, 4)
    q, k, v = qkv[0] * scale, qkv[1], qkv[2]
    attn = jnp.einsum("whnd,whmd->whnm", q, k) + params["rel_bias"][None]
    if ss > 0:
        mask = cfg["attn_mask"]
        nW = mask.shape[0]
        attn = attn.reshape(B, nW, nh, N, N) + mask[None, :, None]
        attn = attn.reshape(-1, nh, N, N)
    attn = jax.nn.softmax(attn, axis=-1)
    out = jnp.einsum("whnm,whmd->whnd", attn, v).transpose(0, 2, 1, 3).reshape(nWtot, N, C)
    out = out @ params["proj_w"] + params["proj_b"][0]

    xr = window_reverse_jnp(out.reshape(-1, ws, ws, C), ws, H, W)
    if ss > 0:
        xr = jnp.roll(xr, (ss, ss), (1, 2))
    x = shortcut + xr.reshape(B, L, C)

    xn2 = ln(x, params["g2"], params["b2"])
    h = xn2 @ params["fc1_w"] + params["fc1_b"][0]
    h = 0.5 * h * (1.0 + lax.erf(h * np.float32(1.0 / np.sqrt(2.0))))
    y = h @ params["fc2_w"] + params["fc2_b"][0]
    return x + y


# ------------------------------------------------------------------------- params
def init_params(key, dim, num_heads, ws, hidden):
    ks = jax.random.split(key, 7)
    s = 0.02
    p = {
        "g1": jnp.ones((1, dim), jnp.float32),
        "b1": jnp.zeros((1, dim), jnp.float32),
        "g2": jnp.ones((1, dim), jnp.float32),
        "b2": jnp.zeros((1, dim), jnp.float32),
        "qkv_w": s * jax.random.normal(ks[0], (dim, 3 * dim), jnp.float32),
        "qkv_b": s * jax.random.normal(ks[1], (1, 3 * dim), jnp.float32),
        "proj_w": s * jax.random.normal(ks[2], (dim, dim), jnp.float32),
        "proj_b": s * jax.random.normal(ks[3], (1, dim), jnp.float32),
        "fc1_w": s * jax.random.normal(ks[4], (dim, hidden), jnp.float32),
        "fc1_b": jnp.zeros((1, hidden), jnp.float32),
        "fc2_w": s * jax.random.normal(ks[5], (hidden, dim), jnp.float32),
        "fc2_b": jnp.zeros((1, dim), jnp.float32),
    }
    table = s * jax.random.normal(ks[6], ((2 * ws - 1) ** 2, num_heads), jnp.float32)
    p["rel_bias"] = relative_position_bias(table, ws, num_heads)
    return p


# --------------------------------------------------------------------------- main
if __name__ == "__main__":
    B, H, W = 2, 8, 8
    dim, num_heads = 32, 4
    window_size = 4                         # min(input_res)=8 > ws=4 -> shift kept
    mlp_ratio = 4.0

    key = jax.random.PRNGKey(0)
    k_x, k_p = jax.random.split(key)
    x = jax.random.normal(k_x, (B, H * W, dim), jnp.float32)
    params = init_params(k_p, dim, num_heads, window_size, int(dim * mlp_ratio))
    params = prepare_params(params)         # bf16 weight copies prepared once

    # Exercise both the shifted (masked) and unshifted (mask-free) kernel paths.
    for shift_size in (2, 0):
        cfg = {
            "window_size": window_size,
            "shift_size": shift_size,
            "num_heads": num_heads,
            "attn_mask": (calculate_mask_np(H, W, window_size, shift_size)
                          if shift_size > 0 else None),
        }
        out = swin_block_forward(x, (H, W), params, cfg)
        out = jax.block_until_ready(out)

        ref = reference_forward(x, (H, W), params, cfg)
        np.testing.assert_allclose(np.asarray(out), np.asarray(ref),
                                   atol=2e-2, rtol=2e-2)
        assert out.shape == (B, H * W, dim)
        assert bool(jnp.all(jnp.isfinite(out)))

    print("KERNEL_OK")
</pallas_src>

<mosaic_0001>
module attributes {stable_mosaic.version = 11 : i64} {
  func.func @window_attn_kernel(%arg0: i32, %arg1: i32, %arg2: memref<1x4x8x32xf32, #tpu.memory_space<vmem>>, %arg3: memref<4x16x16xf32, #tpu.memory_space<vmem>>, %arg4: memref<1x32xf32, #tpu.memory_space<vmem>>, %arg5: memref<1x32xf32, #tpu.memory_space<vmem>>, %arg6: memref<32x96xbf16, #tpu.memory_space<vmem>>, %arg7: memref<1x96xf32, #tpu.memory_space<vmem>>, %arg8: memref<32x32xbf16, #tpu.memory_space<vmem>>, %arg9: memref<1x32xf32, #tpu.memory_space<vmem>>, %arg10: memref<2x16x16xf32, #tpu.memory_space<vmem>>, %arg11: memref<1x4x8x32xf32, #tpu.memory_space<vmem>>) attributes {dimension_semantics = [#tpu.dimension_semantics<parallel>, #tpu.dimension_semantics<parallel>], iteration_bounds = array<i64: 2, 2>, scalar_prefetch = 0 : i64, scratch_operands = 0 : i64, tpu.core_type = #tpu.core_type<tc>, window_params = [{transform_indices = @transform_0, window_bounds = array<i64: 1, 4, 8, 32>}, {pipeline_mode = #tpu.pipeline_mode<synchronous>, transform_indices = @transform_1, window_bounds = array<i64: 4, 16, 16>}, {pipeline_mode = #tpu.pipeline_mode<synchronous>, transform_indices = @transform_2, window_bounds = array<i64: 1, 32>}, {pipeline_mode = #tpu.pipeline_mode<synchronous>, transform_indices = @transform_3, window_bounds = array<i64: 1, 32>}, {pipeline_mode = #tpu.pipeline_mode<synchronous>, transform_indices = @transform_4, window_bounds = array<i64: 32, 96>}, {pipeline_mode = #tpu.pipeline_mode<synchronous>, transform_indices = @transform_5, window_bounds = array<i64: 1, 96>}, {pipeline_mode = #tpu.pipeline_mode<synchronous>, transform_indices = @transform_6, window_bounds = array<i64: 32, 32>}, {pipeline_mode = #tpu.pipeline_mode<synchronous>, transform_indices = @transform_7, window_bounds = array<i64: 1, 32>}, {transform_indices = @transform_8, window_bounds = array<i64: 2, 16, 16>}, {transform_indices = @transform_9, window_bounds = array<i64: 1, 4, 8, 32>}]} {
    %c0 = arith.constant 0 : index
    %c0_0 = arith.constant 0 : index
    %c0_1 = arith.constant 0 : index
    %c0_2 = arith.constant 0 : index
    %0 = vector.load %arg2[%c0, %c0_0, %c0_1, %c0_2] : memref<1x4x8x32xf32, #tpu.memory_space<vmem>>, vector<1x4x8x32xf32>
    %1 = vector.shape_cast %0 : vector<1x4x8x32xf32> to vector<4x8x32xf32>
    %2 = vector.extract_strided_slice %1 {offsets = [0, 0, 0], sizes = [4, 4, 32], strides = [1, 1, 1]} : vector<4x8x32xf32> to vector<4x4x32xf32>
    %3 = vector.shape_cast %2 : vector<4x4x32xf32> to vector<1x16x32xf32>
    %4 = vector.extract_strided_slice %1 {offsets = [0, 4, 0], sizes = [4, 4, 32], strides = [1, 1, 1]} : vector<4x8x32xf32> to vector<4x4x32xf32>
    %5 = vector.shape_cast %4 : vector<4x4x32xf32> to vector<1x16x32xf32>
    %6 = tpu.concatenate %3, %5 in 0 : vector<1x16x32xf32>, vector<1x16x32xf32> -> vector<2x16x32xf32>
    %7 = vector.shape_cast %6 : vector<2x16x32xf32> to vector<32x32xf32>
    %cst = arith.constant dense<0.000000e+00> : vector<32xf32>
    %8 = vector.multi_reduction <add>, %7, %cst [1] : vector<32x32xf32> to vector<32xf32>
    %9 = vector.shape_cast %8 : vector<32xf32> to vector<32x1xf32>
    %cst_3 = arith.constant 3.200000e+01 : f32
    %10 = vector.broadcast %cst_3 : f32 to vector<32x1xf32>
    %11 = arith.divf %9, %10 : vector<32x1xf32>
    %12 = vector.broadcast %11 : vector<32x1xf32> to vector<32x32xf32>
    %13 = arith.subf %7, %12 : vector<32x32xf32>
    %14 = arith.mulf %13, %13 : vector<32x32xf32>
    %cst_4 = arith.constant dense<0.000000e+00> : vector<32xf32>
    %15 = vector.multi_reduction <add>, %14, %cst_4 [1] : vector<32x32xf32> to vector<32xf32>
    %16 = vector.shape_cast %15 : vector<32xf32> to vector<32x1xf32>
    %cst_5 = arith.constant 3.200000e+01 : f32
    %17 = vector.broadcast %cst_5 : f32 to vector<32x1xf32>
    %18 = arith.divf %16, %17 : vector<32x1xf32>
    %19 = vector.broadcast %11 : vector<32x1xf32> to vector<32x32xf32>
    %20 = arith.subf %7, %19 : vector<32x32xf32>
    %cst_6 = arith.constant 9.99999974E-6 : f32
    %21 = vector.broadcast %cst_6 : f32 to vector<32x1xf32>
    %22 = arith.addf %18, %21 : vector<32x1xf32>
    %23 = math.rsqrt %22 : vector<32x1xf32>
    %24 = vector.broadcast %23 : vector<32x1xf32> to vector<32x32xf32>
    %25 = arith.mulf %20, %24 : vector<32x32xf32>
    %c0_7 = arith.constant 0 : index
    %c0_8 = arith.constant 0 : index
    %26 = vector.load %arg4[%c0_7, %c0_8] : memref<1x32xf32, #tpu.memory_space<vmem>>, vector<1x32xf32>
    %27 = vector.broadcast %26 : vector<1x32xf32> to vector<32x32xf32>
    %28 = arith.mulf %25, %27 : vector<32x32xf32>
    %c0_9 = arith.constant 0 : index
    %c0_10 = arith.constant 0 : index
    %29 = vector.load %arg5[%c0_9, %c0_10] : memref<1x32xf32, #tpu.memory_space<vmem>>, vector<1x32xf32>
    %30 = vector.broadcast %29 : vector<1x32xf32> to vector<32x32xf32>
    %31 = arith.addf %28, %30 : vector<32x32xf32>
    %32 = arith.truncf %31 : vector<32x32xf32> to vector<32x32xbf16>
    %c0_11 = arith.constant 0 : index
    %c0_12 = arith.constant 0 : index
    %33 = vector.load %arg6[%c0_11, %c0_12] : memref<32x96xbf16, #tpu.memory_space<vmem>>, vector<32x96xbf16>
    %cst_13 = arith.constant dense<0.000000e+00> : vector<32x96xf32>
    %34 = tpu.matmul %32, %33, %cst_13 {dimension_numbers = #tpu.dot_dimension_numbers<[1], [0], [0], [1], [0, 0, 1, 1], [], []>} : vector<32x32xbf16>, vector<32x96xbf16>, vector<32x96xf32> -> vector<32x96xf32>
    %c0_14 = arith.constant 0 : index
    %c0_15 = arith.constant 0 : index
    %35 = vector.load %arg7[%c0_14, %c0_15] : memref<1x96xf32, #tpu.memory_space<vmem>>, vector<1x96xf32>
    %36 = vector.broadcast %35 : vector<1x96xf32> to vector<32x96xf32>
    %37 = arith.addf %34, %36 : vector<32x96xf32>
    %38 = vector.shape_cast %37 : vector<32x96xf32> to vector<2x16x96xf32>
    %39 = vector.extract_strided_slice %38 {offsets = [0, 0, 0], sizes = [2, 16, 8], strides = [1, 1, 1]} : vector<2x16x96xf32> to vector<2x16x8xf32>
    %40 = vector.extract_strided_slice %38 {offsets = [0, 0, 32], sizes = [2, 16, 8], strides = [1, 1, 1]} : vector<2x16x96xf32> to vector<2x16x8xf32>
    %41 = vector.extract_strided_slice %38 {offsets = [0, 0, 64], sizes = [2, 16, 8], strides = [1, 1, 1]} : vector<2x16x96xf32> to vector<2x16x8xf32>
    %42 = vector.extract_strided_slice %38 {offsets = [0, 0, 8], sizes = [2, 16, 8], strides = [1, 1, 1]} : vector<2x16x96xf32> to vector<2x16x8xf32>
    %43 = vector.extract_strided_slice %38 {offsets = [0, 0, 40], sizes = [2, 16, 8], strides = [1, 1, 1]} : vector<2x16x96xf32> to vector<2x16x8xf32>
    %44 = vector.extract_strided_slice %38 {offsets = [0, 0, 72], sizes = [2, 16, 8], strides = [1, 1, 1]} : vector<2x16x96xf32> to vector<2x16x8xf32>
    %45 = vector.extract_strided_slice %38 {offsets = [0, 0, 16], sizes = [2, 16, 8], strides = [1, 1, 1]} : vector<2x16x96xf32> to vector<2x16x8xf32>
    %46 = vector.extract_strided_slice %38 {offsets = [0, 0, 48], sizes = [2, 16, 8], strides = [1, 1, 1]} : vector<2x16x96xf32> to vector<2x16x8xf32>
    %47 = vector.extract_strided_slice %38 {offsets = [0, 0, 80], sizes = [2, 16, 8], strides = [1, 1, 1]} : vector<2x16x96xf32> to vector<2x16x8xf32>
    %48 = vector.extract_strided_slice %38 {offsets = [0, 0, 24], sizes = [2, 16, 8], strides = [1, 1, 1]} : vector<2x16x96xf32> to vector<2x16x8xf32>
    %49 = vector.extract_strided_slice %38 {offsets = [0, 0, 56], sizes = [2, 16, 8], strides = [1, 1, 1]} : vector<2x16x96xf32> to vector<2x16x8xf32>
    %50 = vector.extract_strided_slice %38 {offsets = [0, 0, 88], sizes = [2, 16, 8], strides = [1, 1, 1]} : vector<2x16x96xf32> to vector<2x16x8xf32>
    %51 = vector.shape_cast %39 : vector<2x16x8xf32> to vector<1x2x16x8xf32>
    %52 = vector.shape_cast %42 : vector<2x16x8xf32> to vector<1x2x16x8xf32>
    %53 = vector.shape_cast %45 : vector<2x16x8xf32> to vector<1x2x16x8xf32>
    %54 = vector.shape_cast %48 : vector<2x16x8xf32> to vector<1x2x16x8xf32>
    %55 = tpu.concatenate %51, %52, %53, %54 in 0 : vector<1x2x16x8xf32>, vector<1x2x16x8xf32>, vector<1x2x16x8xf32>, vector<1x2x16x8xf32> -> vector<4x2x16x8xf32>
    %56 = vector.shape_cast %55 : vector<4x2x16x8xf32> to vector<8x16x8xf32>
    %57 = vector.shape_cast %40 : vector<2x16x8xf32> to vector<1x2x16x8xf32>
    %58 = vector.shape_cast %43 : vector<2x16x8xf32> to vector<1x2x16x8xf32>
    %59 = vector.shape_cast %46 : vector<2x16x8xf32> to vector<1x2x16x8xf32>
    %60 = vector.shape_cast %49 : vector<2x16x8xf32> to vector<1x2x16x8xf32>
    %61 = tpu.concatenate %57, %58, %59, %60 in 0 : vector<1x2x16x8xf32>, vector<1x2x16x8xf32>, vector<1x2x16x8xf32>, vector<1x2x16x8xf32> -> vector<4x2x16x8xf32>
    %62 = vector.shape_cast %61 : vector<4x2x16x8xf32> to vector<8x16x8xf32>
    %63 = vector.shape_cast %41 : vector<2x16x8xf32> to vector<1x2x16x8xf32>
    %64 = vector.shape_cast %44 : vector<2x16x8xf32> to vector<1x2x16x8xf32>
    %65 = vector.shape_cast %47 : vector<2x16x8xf32> to vector<1x2x16x8xf32>
    %66 = vector.shape_cast %50 : vector<2x16x8xf32> to vector<1x2x16x8xf32>
    %67 = tpu.concatenate %63, %64, %65, %66 in 0 : vector<1x2x16x8xf32>, vector<1x2x16x8xf32>, vector<1x2x16x8xf32>, vector<1x2x16x8xf32> -> vector<4x2x16x8xf32>
    %68 = vector.shape_cast %67 : vector<4x2x16x8xf32> to vector<8x16x8xf32>
    %cst_16 = arith.constant 0.353553385 : f32
    %69 = vector.broadcast %cst_16 : f32 to vector<8x16x8xf32>
    %70 = arith.mulf %56, %69 : vector<8x16x8xf32>
    %71 = arith.truncf %70 : vector<8x16x8xf32> to vector<8x16x8xbf16>
    %72 = arith.truncf %62 : vector<8x16x8xf32> to vector<8x16x8xbf16>
    "tpu.trace_start"() <{level = 10 : i32, message = "bnd,bmd->bnm"}> : () -> ()
    %cst_17 = arith.constant dense<0.000000e+00> : vector<8x16x16xf32>
    %73 = tpu.matmul %71, %72, %cst_17 {dimension_numbers = #tpu.dot_dimension_numbers<[2], [2], [1], [1], [0, 0, 0, 1, 1, 1], [0], [0]>} : vector<8x16x8xbf16>, vector<8x16x8xbf16>, vector<8x16x16xf32> -> vector<8x16x16xf32>
    "tpu.trace_stop"() : () -> ()
    %74 = vector.shape_cast %73 : vector<8x16x16xf32> to vector<4x2x16x16xf32>
    %c0_18 = arith.constant 0 : index
    %c0_19 = arith.constant 0 : index
    %c0_20 = arith.constant 0 : index
    %75 = vector.load %arg3[%c0_18, %c0_19, %c0_20] : memref<4x16x16xf32, #tpu.memory_space<vmem>>, vector<4x16x16xf32>
    %76 = vector.shape_cast %75 : vector<4x16x16xf32> to vector<4x1x16x16xf32>
    %77 = vector.broadcast %76 : vector<4x1x16x16xf32> to vector<4x2x16x16xf32>
    %78 = arith.addf %74, %77 : vector<4x2x16x16xf32>
    %c0_21 = arith.constant 0 : index
    %c0_22 = arith.constant 0 : index
    %c0_23 = arith.constant 0 : index
    %79 = vector.load %arg10[%c0_21, %c0_22, %c0_23] : memref<2x16x16xf32, #tpu.memory_space<vmem>>, vector<2x16x16xf32>
    %80 = vector.shape_cast %79 : vector<2x16x16xf32> to vector<1x2x16x16xf32>
    %81 = vector.broadcast %80 : vector<1x2x16x16xf32> to vector<4x2x16x16xf32>
    %82 = arith.addf %78, %81 : vector<4x2x16x16xf32>
    %cst_24 = arith.constant dense<0xFF800000> : vector<4x2x16xf32>
    %83 = vector.multi_reduction <maximumf>, %82, %cst_24 [3] : vector<4x2x16x16xf32> to vector<4x2x16xf32>
    %84 = vector.shape_cast %83 : vector<4x2x16xf32> to vector<4x2x16x1xf32>
    %85 = vector.broadcast %84 : vector<4x2x16x1xf32> to vector<4x2x16x16xf32>
    %86 = arith.subf %82, %85 : vector<4x2x16x16xf32>
    %87 = math.exp %86 : vector<4x2x16x16xf32>
    %cst_25 = arith.constant dense<0.000000e+00> : vector<4x2x16xf32>
    %88 = vector.multi_reduction <add>, %87, %cst_25 [3] : vector<4x2x16x16xf32> to vector<4x2x16xf32>
    %89 = vector.shape_cast %88 : vector<4x2x16xf32> to vector<4x2x16x1xf32>
    %90 = tpu.reciprocal %89 {approx = true} : vector<4x2x16x1xf32> -> vector<4x2x16x1xf32>
    %91 = vector.broadcast %90 : vector<4x2x16x1xf32> to vector<4x2x16x16xf32>
    %92 = arith.mulf %87, %91 : vector<4x2x16x16xf32>
    %93 = vector.shape_cast %92 : vector<4x2x16x16xf32> to vector<8x16x16xf32>
    %94 = arith.truncf %93 : vector<8x16x16xf32> to vector<8x16x16xbf16>
    %95 = arith.truncf %68 : vector<8x16x8xf32> to vector<8x16x8xbf16>
    "tpu.trace_start"() <{level = 10 : i32, message = "bnm,bmd->bnd"}> : () -> ()
    %cst_26 = arith.constant dense<0.000000e+00> : vector<8x16x8xf32>
    %96 = tpu.matmul %94, %95, %cst_26 {dimension_numbers = #tpu.dot_dimension_numbers<[2], [1], [1], [2], [0, 0, 0, 1, 1, 2], [0], [0]>} : vector<8x16x16xbf16>, vector<8x16x8xbf16>, vector<8x16x8xf32> -> vector<8x16x8xf32>
    "tpu.trace_stop"() : () -> ()
    %97 = vector.shape_cast %96 : vector<8x16x8xf32> to vector<4x2x16x8xf32>
    %98 = vector.extract_strided_slice %97 {offsets = [0, 0, 0, 0], sizes = [1, 2, 16, 8], strides = [1, 1, 1, 1]} : vector<4x2x16x8xf32> to vector<1x2x16x8xf32>
    %99 = vector.shape_cast %98 : vector<1x2x16x8xf32> to vector<2x16x8xf32>
    %100 = vector.shape_cast %99 : vector<2x16x8xf32> to vector<32x8xf32>
    %101 = vector.extract_strided_slice %97 {offsets = [1, 0, 0, 0], sizes = [1, 2, 16, 8], strides = [1, 1, 1, 1]} : vector<4x2x16x8xf32> to vector<1x2x16x8xf32>
    %102 = vector.shape_cast %101 : vector<1x2x16x8xf32> to vector<2x16x8xf32>
    %103 = vector.shape_cast %102 : vector<2x16x8xf32> to vector<32x8xf32>
    %104 = vector.extract_strided_slice %97 {offsets = [2, 0, 0, 0], sizes = [1, 2, 16, 8], strides = [1, 1, 1, 1]} : vector<4x2x16x8xf32> to vector<1x2x16x8xf32>
    %105 = vector.shape_cast %104 : vector<1x2x16x8xf32> to vector<2x16x8xf32>
    %106 = vector.shape_cast %105 : vector<2x16x8xf32> to vector<32x8xf32>
    %107 = vector.extract_strided_slice %97 {offsets = [3, 0, 0, 0], sizes = [1, 2, 16, 8], strides = [1, 1, 1, 1]} : vector<4x2x16x8xf32> to vector<1x2x16x8xf32>
    %108 = vector.shape_cast %107 : vector<1x2x16x8xf32> to vector<2x16x8xf32>
    %109 = vector.shape_cast %108 : vector<2x16x8xf32> to vector<32x8xf32>
    %110 = tpu.concatenate %100, %103, %106, %109 in 1 : vector<32x8xf32>, vector<32x8xf32>, vector<32x8xf32>, vector<32x8xf32> -> vector<32x32xf32>
    %111 = arith.truncf %110 : vector<32x32xf32> to vector<32x32xbf16>
    %c0_27 = arith.constant 0 : index
    %c0_28 = arith.constant 0 : index
    %112 = vector.load %arg8[%c0_27, %c0_28] : memref<32x32xbf16, #tpu.memory_space<vmem>>, vector<32x32xbf16>
    %cst_29 = arith.constant dense<0.000000e+00> : vector<32x32xf32>
    %113 = tpu.matmul %111, %112, %cst_29 {dimension_numbers = #tpu.dot_dimension_numbers<[1], [0], [0], [1], [0, 0, 1, 1], [], []>} : vector<32x32xbf16>, vector<32x32xbf16>, vector<32x32xf32> -> vector<32x32xf32>
    %c0_30 = arith.constant 0 : index
    %c0_31 = arith.constant 0 : index
    %114 = vector.load %arg9[%c0_30, %c0_31] : memref<1x32xf32, #tpu.memory_space<vmem>>, vector<1x32xf32>
    %115 = vector.broadcast %114 : vector<1x32xf32> to vector<32x32xf32>
    %116 = arith.addf %113, %115 : vector<32x32xf32>
    %117 = arith.addf %116, %7 : vector<32x32xf32>
    %118 = vector.shape_cast %117 : vector<32x32xf32> to vector<2x16x32xf32>
    %119 = vector.extract_strided_slice %118 {offsets = [0, 0, 0], sizes = [1, 16, 32], strides = [1, 1, 1]} : vector<2x16x32xf32> to vector<1x16x32xf32>
    %120 = vector.shape_cast %119 : vector<1x16x32xf32> to vector<16x32xf32>
    %121 = vector.shape_cast %120 : vector<16x32xf32> to vector<4x4x32xf32>
    %122 = vector.extract_strided_slice %118 {offsets = [1, 0, 0], sizes = [1, 16, 32], strides = [1, 1, 1]} : vector<2x16x32xf32> to vector<1x16x32xf32>
    %123 = vector.shape_cast %122 : vector<1x16x32xf32> to vector<16x32xf32>
    %124 = vector.shape_cast %123 : vector<16x32xf32> to vector<4x4x32xf32>
    %125 = tpu.concatenate %121, %124 in 1 : vector<4x4x32xf32>, vector<4x4x32xf32> -> vector<4x8x32xf32>
    %126 = vector.shape_cast %125 : vector<4x8x32xf32> to vector<1x4x8x32xf32>
    %c0_32 = arith.constant 0 : index
    %c0_33 = arith.constant 0 : index
    %c0_34 = arith.constant 0 : index
    %c0_35 = arith.constant 0 : index
    %127 = vector.load %arg11[%c0_32, %c0_33, %c0_34, %c0_35] : memref<1x4x8x32xf32, #tpu.memory_space<vmem>>, vector<1x4x8x32xf32>
    tpu.vector_store %arg11[%c0_32, %c0_33, %c0_34, %c0_35], %126 {strides = array<i32>} : memref<1x4x8x32xf32, #tpu.memory_space<vmem>>, vector<1x4x8x32xf32>,
    return
  }
  func.func @transform_0(%arg0: i32, %arg1: i32) -> (i32, i32, i32, i32) {
    %c0_i32 = arith.constant 0 : i32
    %c0_i32_0 = arith.constant 0 : i32
    %c0_i32_1 = arith.constant 0 : i32
    return %arg0, %arg1, %c0_i32, %c0_i32_0 : i32, i32, i32, i32
  }
  func.func @transform_1(%arg0: i32, %arg1: i32) -> (i32, i32, i32) {
    %c0_i32 = arith.constant 0 : i32
    %c0_i32_0 = arith.constant 0 : i32
    %c0_i32_1 = arith.constant 0 : i32
    %c0_i32_2 = arith.constant 0 : i32
    return %c0_i32, %c0_i32_0, %c0_i32_1 : i32, i32, i32
  }
  func.func @transform_2(%arg0: i32, %arg1: i32) -> (i32, i32) {
    %c0_i32 = arith.constant 0 : i32
    %c0_i32_0 = arith.constant 0 : i32
    %c0_i32_1 = arith.constant 0 : i32
    return %c0_i32, %c0_i32_0 : i32, i32
  }
  func.func @transform_3(%arg0: i32, %arg1: i32) -> (i32, i32) {
    %c0_i32 = arith.constant 0 : i32
    %c0_i32_0 = arith.constant 0 : i32
    %c0_i32_1 = arith.constant 0 : i32
    return %c0_i32, %c0_i32_0 : i32, i32
  }
  func.func @transform_4(%arg0: i32, %arg1: i32) -> (i32, i32) {
    %c0_i32 = arith.constant 0 : i32
    %c0_i32_0 = arith.constant 0 : i32
    %c0_i32_1 = arith.constant 0 : i32
    return %c0_i32, %c0_i32_0 : i32, i32
  }
  func.func @transform_5(%arg0: i32, %arg1: i32) -> (i32, i32) {
    %c0_i32 = arith.constant 0 : i32
    %c0_i32_0 = arith.constant 0 : i32
    %c0_i32_1 = arith.constant 0 : i32
    return %c0_i32, %c0_i32_0 : i32, i32
  }
  func.func @transform_6(%arg0: i32, %arg1: i32) -> (i32, i32) {
    %c0_i32 = arith.constant 0 : i32
    %c0_i32_0 = arith.constant 0 : i32
    %c0_i32_1 = arith.constant 0 : i32
    return %c0_i32, %c0_i32_0 : i32, i32
  }
  func.func @transform_7(%arg0: i32, %arg1: i32) -> (i32, i32) {
    %c0_i32 = arith.constant 0 : i32
    %c0_i32_0 = arith.constant 0 : i32
    %c0_i32_1 = arith.constant 0 : i32
    return %c0_i32, %c0_i32_0 : i32, i32
  }
  func.func @transform_8(%arg0: i32, %arg1: i32) -> (i32, i32, i32) {
    %c0_i32 = arith.constant 0 : i32
    %c0_i32_0 = arith.constant 0 : i32
    %c0_i32_1 = arith.constant 0 : i32
    return %arg1, %c0_i32, %c0_i32_0 : i32, i32, i32
  }
  func.func @transform_9(%arg0: i32, %arg1: i32) -> (i32, i32, i32, i32) {
    %c0_i32 = arith.constant 0 : i32
    %c0_i32_0 = arith.constant 0 : i32
    %c0_i32_1 = arith.constant 0 : i32
    return %arg0, %arg1, %c0_i32, %c0_i32_0 : i32, i32, i32, i32
  }
}

</mosaic_0001>

<llo_original>
// kernel: tpu_custom_call.1
$region0: #{tpu_custom_call.1}
  #allocation0 [shape = 'u32[]', space=smem, size = 0x4, offset = 0x4, fixed_abs, tag = 'smem constant byte address 0x4 - core index']
  #allocation1 [shape = 'u32[144,128]{1,0:T(1,128)}', space=vmem, size = 0x12000, scoped, tag = 'internal scratch']
  %s0 = inlined_call_operand.hbm [shape: f32[2,8,8,32], index: 0, kind: input, shape index: {}]
  %s1 = inlined_call_operand.hbm [shape: f32[4,16,16], index: 1, kind: input, shape index: {}]
  %s2 = inlined_call_operand.vmem [shape: f32[1,32], index: 2, kind: input, shape index: {}]
  %s3 = inlined_call_operand.vmem [shape: f32[1,32], index: 3, kind: input, shape index: {}]
  %s4 = inlined_call_operand.hbm [shape: bf16[32,96], index: 4, kind: input, shape index: {}]
  %s5 = inlined_call_operand.vmem [shape: f32[1,96], index: 5, kind: input, shape index: {}]
  %s6 = inlined_call_operand.hbm [shape: bf16[32,32], index: 6, kind: input, shape index: {}]
  %s7 = inlined_call_operand.vmem [shape: f32[1,32], index: 7, kind: input, shape index: {}]
  %s8 = inlined_call_operand.hbm [shape: f32[4,16,16], index: 8, kind: input, shape index: {}]
  %s9 = inlined_call_operand.hbm [shape: f32[2,8,8,32], index: 9, kind: output, shape index: {}]
  %s10 = sld [smem:[#allocation0]]
  $region89: #{tpu_custom_call.1} parent=0
    _
  %s12 = ssub.s32 1, %s10
  %s13 = scalar_select 0, %s12, %s10
  $region1: #{tpu_custom_call.1} parent=0
    #allocation2 [shape = 'u8[32768]{0}', space=vmem, size = 0x8000, scoped, tag = 'input window, operand 0']
    #allocation3 [shape = 's32[2]{0}', space=sflag, size = 0x8, scoped, tag = 'scoped memory for tpu_custom_call.1']
    #allocation4 [shape = 's32[2]{0}', space=sflag, size = 0x8, scoped, tag = 'scoped memory for tpu_custom_call.1']
    #allocation5 [shape = 'u8[32768]{0}', space=vmem, size = 0x8000, scoped, tag = 'input window, operand 1, single buffered']
    #allocation6 [shape = 's32[1]{0}', space=sflag, size = 0x4, scoped, tag = 'scoped memory for tpu_custom_call.1']
    #allocation7 [shape = 'u8[8192]{0}', space=vmem, size = 0x2000, scoped, tag = 'input window, operand 4, single buffered']
    #allocation8 [shape = 'u8[8192]{0}', space=vmem, size = 0x2000, scoped, tag = 'input window, operand 6, single buffered']
    #allocation9 [shape = 's32[1]{0}', space=sflag, size = 0x4, scoped, tag = 'scoped memory for tpu_custom_call.1']
    #allocation10 [shape = 'u8[32768]{0}', space=vmem, size = 0x8000, scoped, tag = 'input window, operand 8']
    #allocation11 [shape = 'u8[32768]{0}', space=vmem, size = 0x8000, scoped, tag = 'output window, operand 0']
    %14 = vsyncpa [#allocation3], 0
    %s15 = scalar_lea.sflag [#allocation3], 1
    %16 = vsyncpa %s15, 0
    %17 = vsyncpa [#allocation6], 0
    %18 = vsyncpa [#allocation9], 0
    %19 = vsyncpa [#allocation4], 0
    %s20 = scalar_lea.sflag [#allocation4], 1
    %21 = vsyncpa %s20, 0
    loop: start=0, step=1, limit=6
    $region2: #{tpu_custom_call.1} parent=1 // loop_pre_header
      _
    $region3: #{tpu_custom_call.1} parent=1 // loop_header
      %s23 = sphi 0, %s27
      %p24 = scmp.ge.s32.totalorder %s23, 6
      %s30 = sphi 0, %s42
      %s31 = sphi 0, %s38
      %s32 = sphi 0, %s30
      %s33 = sphi 0, %s31
      %s34 = sphi 0, %s32
      %s35 = sphi 0, %s33
      %s47 = sphi 0, %s49
      %s50 = sphi 0, %s47
      %s51 = sphi 0, %s50
      %s67 = sphi 0, %s51
      %s71 = sphi 0, %s71
      %s73 = sphi 0, %s71
      %s74 = sphi 0, %s73
      %s88 = sphi 0, %s74
      %s92 = sphi 0, %s92
      %s94 = sphi 0, %s92
      %s95 = sphi 0, %s94
      %s109 = sphi 0, %s95
      %s113 = sphi 0, %s113
      %s115 = sphi 0, %s113
      %s116 = sphi 0, %s115
      %s130 = sphi 0, %s116
      %s134 = sphi 0, %s134
      %s136 = sphi 0, %s134
      %s137 = sphi 0, %s136
      %s151 = sphi 0, %s137
      %s155 = sphi 0, %s155
      %s157 = sphi 0, %s155
      %s158 = sphi 0, %s157
      %s172 = sphi 0, %s158
      %s176 = sphi 0, %s176
      %s178 = sphi 0, %s176
      %s179 = sphi 0, %s178
      %s193 = sphi 0, %s179
      %s197 = sphi 0, %s197
      %s199 = sphi 0, %s197
      %s200 = sphi 0, %s199
      %s214 = sphi 0, %s200
      %s220 = sphi 0, %s222
      %s223 = sphi 0, %s220
      %s224 = sphi 0, %s223
      %s240 = sphi 0, %s224
      %s248 = sphi 0, %s250
      %s251 = sphi 0, %s248
      %s252 = sphi 0, %s251
      %s268 = sphi 0, %s252
    $region4: #{tpu_custom_call.1} parent=1 // loop_header_branch
      %26 = sbr.rel (%p24) target = $region8
    $region5: #{tpu_custom_call.1} parent=1 // loop_body
      %s28 = ssub.s32 %s23, 1
      %s29 = ssub.s32 %s23, 2
      %s36 = sadd.s32 1, %s31
      %p37 = scmp.ge.s32.totalorder %s36, 2
      %s38 = scalar_select %p37, 0, %s36
      %s39 = sadd.s32 1, %s30
      %s40 = scalar_select %p37, %s39, %s30
      %p41 = scmp.ge.s32.totalorder %s40, 2
      %s42 = scalar_select %p41, 0, %s40
      %s43 = ssub.s32 %s30, %s42
      %s44 = ssub.s32 %s31, %s38
      %s45 = sor.u32 %s43, %s44
      %p46 = scmp.eq.s32.totalorder %s45, 0
      %s48 = sadd.s32 %s47, 1
      %s49 = scalar_select %p46, %s47, %s48
      %p52 = pneg %p46
      %p53 = scmp.eq.s32.totalorder %s23, 3
      %p54 = por %p52, %p53
      %p55 = scmp.ne.s32.totalorder %s47, %s50
      %p56 = scmp.eq.s32.totalorder %s23, 0
      %p57 = por %p55, %p56
      %p58 = scmp.ne.s32.totalorder %s47, %s50
      %p59 = scmp.eq.s32.totalorder %s28, 3
      %p60 = por %p58, %p59
      %p61 = scmp.ne.s32.totalorder %s50, %s51
      %p62 = scmp.eq.s32.totalorder %s28, 0
      %p63 = por %p61, %p62
      %p64 = scmp.ne.s32.totalorder %s50, %s51
      %p65 = scmp.eq.s32.totalorder %s29, 3
      %p66 = por %p64, %p65
      %p68 = scmp.ne.s32.totalorder %s51, %s67
      %p69 = scmp.eq.s32.totalorder %s29, 0
      %p70 = por %p68, %p69
      %s72 = sadd.s32 %s71, 1
      %p75 = scmp.eq.s32.totalorder %s23, 3
      %p76 = scmp.ne.s32.totalorder %s71, %s73
      %p77 = scmp.eq.s32.totalorder %s23, 0
      %p78 = por %p76, %p77
      %p79 = scmp.ne.s32.totalorder %s71, %s73
      %p80 = scmp.eq.s32.totalorder %s28, 3
      %p81 = por %p79, %p80
      %p82 = scmp.ne.s32.totalorder %s73, %s74
      %p83 = scmp.eq.s32.totalorder %s28, 0
      %p84 = por %p82, %p83
      %p85 = scmp.ne.s32.totalorder %s73, %s74
      %p86 = scmp.eq.s32.totalorder %s29, 3
      %p87 = por %p85, %p86
      %p89 = scmp.ne.s32.totalorder %s74, %s88
      %p90 = scmp.eq.s32.totalorder %s29, 0
      %p91 = por %p89, %p90
      %s93 = sadd.s32 %s92, 1
      %p96 = scmp.eq.s32.totalorder %s23, 3
      %p97 = scmp.ne.s32.totalorder %s92, %s94
      %p98 = scmp.eq.s32.totalorder %s23, 0
      %p99 = por %p97, %p98
      %p100 = scmp.ne.s32.totalorder %s92, %s94
      %p101 = scmp.eq.s32.totalorder %s28, 3
      %p102 = por %p100, %p101
      %p103 = scmp.ne.s32.totalorder %s94, %s95
      %p104 = scmp.eq.s32.totalorder %s28, 0
      %p105 = por %p103, %p104
      %p106 = scmp.ne.s32.totalorder %s94, %s95
      %p107 = scmp.eq.s32.totalorder %s29, 3
      %p108 = por %p106, %p107
      %p110 = scmp.ne.s32.totalorder %s95, %s109
      %p111 = scmp.eq.s32.totalorder %s29, 0
      %p112 = por %p110, %p111
      %s114 = sadd.s32 %s113, 1
      %p117 = scmp.eq.s32.totalorder %s23, 3
      %p118 = scmp.ne.s32.totalorder %s113, %s115
      %p119 = scmp.eq.s32.totalorder %s23, 0
      %p120 = por %p118, %p119
      %p121 = scmp.ne.s32.totalorder %s113, %s115
      %p122 = scmp.eq.s32.totalorder %s28, 3
      %p123 = por %p121, %p122
      %p124 = scmp.ne.s32.totalorder %s115, %s116
      %p125 = scmp.eq.s32.totalorder %s28, 0
      %p126 = por %p124, %p125
      %p127 = scmp.ne.s32.totalorder %s115, %s116
      %p128 = scmp.eq.s32.totalorder %s29, 3
      %p129 = por %p127, %p128
      %p131 = scmp.ne.s32.totalorder %s116, %s130
      %p132 = scmp.eq.s32.totalorder %s29, 0
      %p133 = por %p131, %p132
      %s135 = sadd.s32 %s134, 1
      %p138 = scmp.eq.s32.totalorder %s23, 3
      %p139 = scmp.ne.s32.totalorder %s134, %s136
      %p140 = scmp.eq.s32.totalorder %s23, 0
      %p141 = por %p139, %p140
      %p142 = scmp.ne.s32.totalorder %s134, %s136
      %p143 = scmp.eq.s32.totalorder %s28, 3
      %p144 = por %p142, %p143
      %p145 = scmp.ne.s32.totalorder %s136, %s137
      %p146 = scmp.eq.s32.totalorder %s28, 0
      %p147 = por %p145, %p146
      %p148 = scmp.ne.s32.totalorder %s136, %s137
      %p149 = scmp.eq.s32.totalorder %s29, 3
      %p150 = por %p148, %p149
      %p152 = scmp.ne.s32.totalorder %s137, %s151
      %p153 = scmp.eq.s32.totalorder %s29, 0
      %p154 = por %p152, %p153
      %s156 = sadd.s32 %s155, 1
      %p159 = scmp.eq.s32.totalorder %s23, 3
      %p160 = scmp.ne.s32.totalorder %s155, %s157
      %p161 = scmp.eq.s32.totalorder %s23, 0
      %p162 = por %p160, %p161
      %p163 = scmp.ne.s32.totalorder %s155, %s157
      %p164 = scmp.eq.s32.totalorder %s28, 3
      %p165 = por %p163, %p164
      %p166 = scmp.ne.s32.totalorder %s157, %s158
      %p167 = scmp.eq.s32.totalorder %s28, 0
      %p168 = por %p166, %p167
      %p169 = scmp.ne.s32.totalorder %s157, %s158
      %p170 = scmp.eq.s32.totalorder %s29, 3
      %p171 = por %p169, %p170
      %p173 = scmp.ne.s32.totalorder %s158, %s172
      %p174 = scmp.eq.s32.totalorder %s29, 0
      %p175 = por %p173, %p174
      %s177 = sadd.s32 %s176, 1
      %p180 = scmp.eq.s32.totalorder %s23, 3
      %p181 = scmp.ne.s32.totalorder %s176, %s178
      %p182 = scmp.eq.s32.totalorder %s23, 0
      %p183 = por %p181, %p182
      %p184 = scmp.ne.s32.totalorder %s176, %s178
      %p185 = scmp.eq.s32.totalorder %s28, 3
      %p186 = por %p184, %p185
      %p187 = scmp.ne.s32.totalorder %s178, %s179
      %p188 = scmp.eq.s32.totalorder %s28, 0
      %p189 = por %p187, %p188
      %p190 = scmp.ne.s32.totalorder %s178, %s179
      %p191 = scmp.eq.s32.totalorder %s29, 3
      %p192 = por %p190, %p191
      %p194 = scmp.ne.s32.totalorder %s179, %s193
      %p195 = scmp.eq.s32.totalorder %s29, 0
      %p196 = por %p194, %p195
      %s198 = sadd.s32 %s197, 1
      %p201 = scmp.eq.s32.totalorder %s23, 3
      %p202 = scmp.ne.s32.totalorder %s197, %s199
      %p203 = scmp.eq.s32.totalorder %s23, 0
      %p204 = por %p202, %p203
      %p205 = scmp.ne.s32.totalorder %s197, %s199
      %p206 = scmp.eq.s32.totalorder %s28, 3
      %p207 = por %p205, %p206
      %p208 = scmp.ne.s32.totalorder %s199, %s200
      %p209 = scmp.eq.s32.totalorder %s28, 0
      %p210 = por %p208, %p209
      %p211 = scmp.ne.s32.totalorder %s199, %s200
      %p212 = scmp.eq.s32.totalorder %s29, 3
      %p213 = por %p211, %p212
      %p215 = scmp.ne.s32.totalorder %s200, %s214
      %p216 = scmp.eq.s32.totalorder %s29, 0
      %p217 = por %p215, %p216
      %s218 = ssub.s32 %s31, %s38
      %p219 = scmp.eq.s32.totalorder %s218, 0
      %s221 = sadd.s32 %s220, 1
      %s222 = scalar_select %p219, %s220, %s221
      %p225 = pneg %p219
      %p226 = scmp.eq.s32.totalorder %s23, 3
      %p227 = por %p225, %p226
      %p228 = scmp.ne.s32.totalorder %s220, %s223
      %p229 = scmp.eq.s32.totalorder %s23, 0
      %p230 = por %p228, %p229
      %p231 = scmp.ne.s32.totalorder %s220, %s223
      %p232 = scmp.eq.s32.totalorder %s28, 3
      %p233 = por %p231, %p232
      %p234 = scmp.ne.s32.totalorder %s223, %s224
      %p235 = scmp.eq.s32.totalorder %s28, 0
      %p236 = por %p234, %p235
      %p237 = scmp.ne.s32.totalorder %s223, %s224
      %p238 = scmp.eq.s32.totalorder %s29, 3
      %p239 = por %p237, %p238
      %p241 = scmp.ne.s32.totalorder %s224, %s240
      %p242 = scmp.eq.s32.totalorder %s29, 0
      %p243 = por %p241, %p242
      %s244 = ssub.s32 %s30, %s42
      %s245 = ssub.s32 %s31, %s38
      %s246 = sor.u32 %s244, %s245
      %p247 = scmp.eq.s32.totalorder %s246, 0
      %s249 = sadd.s32 %s248, 1
      %s250 = scalar_select %p247, %s248, %s249
      %p253 = pneg %p247
      %p254 = scmp.eq.s32.totalorder %s23, 3
      %p255 = por %p253, %p254
      %p256 = scmp.ne.s32.totalorder %s248, %s251
      %p257 = scmp.eq.s32.totalorder %s23, 0
      %p258 = por %p256, %p257
      %p259 = scmp.ne.s32.totalorder %s248, %s251
      %p260 = scmp.eq.s32.totalorder %s28, 3
      %p261 = por %p259, %p260
      %p262 = scmp.ne.s32.totalorder %s251, %s252
      %p263 = scmp.eq.s32.totalorder %s28, 0
      %p264 = por %p262, %p263
      %p265 = scmp.ne.s32.totalorder %s251, %s252
      %p266 = scmp.eq.s32.totalorder %s29, 3
      %p267 = por %p265, %p266
      %p269 = scmp.ne.s32.totalorder %s252, %s268
      %p270 = scmp.eq.s32.totalorder %s29, 0
      %p271 = por %p269, %p270
      %p272 = scmp.le.s32.totalorder 1, %s23
      %p273 = scmp.lt.s32.totalorder %s23, 5
      %p274 = pnand %p272, %p273
      %p275 = pneg %p274
      // Predicated region
      $region9: #{tpu_custom_call.1} parent=5 // pred_check
        _
      $region10: #{tpu_custom_call.1} parent=5 // pred_check_branch
        %277 = sbr.rel (%p274) target = $region12
      $region11: #{tpu_custom_call.1} parent=5 // pred_region
        %s278 = ssub.s32 %s23, 1
        // Predicated region
        $region13: #{tpu_custom_call.1} parent=11 // pred_check
          %p279 = pneg %p84
        $region14: #{tpu_custom_call.1} parent=11 // pred_check_branch
          %281 = sbr.rel (%p279) target = $region16
        $region15: #{tpu_custom_call.1} parent=11 // pred_region
          %s283 = ssub.s32 1024, 1024
          %284 = vsyncadd [#allocation6], %s283
          %s285 = sshll.u32 [#allocation5], 4
          %s286 = int_to_ptr.vmem [resolvable:$true] %s285
          %291 = dma.hbm_to_vmem [thread:$0]  %s1, 1024, %s286, [#allocation6], 128, 128, 8
        $region16: #{tpu_custom_call.1} parent=11 // pred_fallthru
          _
        // Predicated region
        $region17: #{tpu_custom_call.1} parent=11 // pred_check
          %p292 = pneg %p105
        $region18: #{tpu_custom_call.1} parent=11 // pred_check_branch
          %294 = sbr.rel (%p292) target = $region20
        $region19: #{tpu_custom_call.1} parent=11 // pred_region
          _
        $region20: #{tpu_custom_call.1} parent=11 // pred_fallthru
          _
        // Predicated region
        $region21: #{tpu_custom_call.1} parent=11 // pred_check
          %p295 = pneg %p126
        $region22: #{tpu_custom_call.1} parent=11 // pred_check_branch
          %297 = sbr.rel (%p295) target = $region24
        $region23: #{tpu_custom_call.1} parent=11 // pred_region
          _
        $region24: #{tpu_custom_call.1} parent=11 // pred_fallthru
          _
        // Predicated region
        $region25: #{tpu_custom_call.1} parent=11 // pred_check
          %p298 = pneg %p147
        $region26: #{tpu_custom_call.1} parent=11 // pred_check_branch
          %300 = sbr.rel (%p298) target = $region28
        $region27: #{tpu_custom_call.1} parent=11 // pred_region
          %s302 = ssub.s32 256, 256
          %303 = vsyncadd [#allocation6], %s302
          %s304 = sshll.u32 [#allocation7], 4
          %s305 = int_to_ptr.vmem [resolvable:$true] %s304
          %310 = dma.hbm_to_vmem [thread:$0]  %s4, 256, %s305, [#allocation6], 64, 64, 4
        $region28: #{tpu_custom_call.1} parent=11 // pred_fallthru
          _
        // Predicated region
        $region29: #{tpu_custom_call.1} parent=11 // pred_check
          %p311 = pneg %p168
        $region30: #{tpu_custom_call.1} parent=11 // pred_check_branch
          %313 = sbr.rel (%p311) target = $region32
        $region31: #{tpu_custom_call.1} parent=11 // pred_region
          _
        $region32: #{tpu_custom_call.1} parent=11 // pred_fallthru
          _
        // Predicated region
        $region33: #{tpu_custom_call.1} parent=11 // pred_check
          %p314 = pneg %p189
        $region34: #{tpu_custom_call.1} parent=11 // pred_check_branch
          %316 = sbr.rel (%p314) target = $region36
        $region35: #{tpu_custom_call.1} parent=11 // pred_region
          %s318 = ssub.s32 256, 256
          %319 = vsyncadd [#allocation9], %s318
          %s320 = sshll.u32 [#allocation8], 4
          %s321 = int_to_ptr.vmem [resolvable:$true] %s320
          %326 = dma.hbm_to_vmem [thread:$0]  %s6, 256, %s321, [#allocation9], 64, 64, 4
        $region36: #{tpu_custom_call.1} parent=11 // pred_fallthru
          _
        // Predicated region
        $region37: #{tpu_custom_call.1} parent=11 // pred_check
          %p327 = pneg %p210
        $region38: #{tpu_custom_call.1} parent=11 // pred_check_branch
          %329 = sbr.rel (%p327) target = $region40
        $region39: #{tpu_custom_call.1} parent=11 // pred_region
          _
        $region40: #{tpu_custom_call.1} parent=11 // pred_fallthru
          _
      $region12: #{tpu_custom_call.1} parent=5 // pred_fallthru
        _
      %p330 = scmp.lt.s32.totalorder %s23, 4
      // Predicated region
      $region41: #{tpu_custom_call.1} parent=5 // pred_check
        %p331 = pneg %p330
      $region42: #{tpu_custom_call.1} parent=5 // pred_check_branch
        %333 = sbr.rel (%p331) target = $region44
      $region43: #{tpu_custom_call.1} parent=5 // pred_region
        // Predicated region
        $region45: #{tpu_custom_call.1} parent=43 // pred_check
          %p334 = pneg %p57
        $region46: #{tpu_custom_call.1} parent=43 // pred_check_branch
          %336 = sbr.rel (%p334) target = $region48
        $region47: #{tpu_custom_call.1} parent=43 // pred_region
          %s337 = sand.u32 %s23, 1
          %s338 = scalar_lea.sflag [#allocation3], %s337
          %s339 = sand.u32 %s47, 1
          %s340 = smul.addr %s339, 32
          %s341 = scalar_lea.vmem [#allocation2], %s340
          %s342 = smul.u32 4, %s31
          %s344 = ssub.s32 512, 512
          %345 = vsyncadd %s338, %s344
          %s346 = smul.addr %s30, 8
          %s347 = sadd.s32 %s342, %s346
          %s348 = smul.addr %s347, 128
          %s349 = scalar_lea.hbm %s0, %s348
          %s350 = sshll.u32 %s341, 4
          %s351 = int_to_ptr.vmem [resolvable:$true] %s350
          %356 = dma.hbm_to_vmem [thread:$0]  %s349, 512, %s351, %s338, 128, 128, 8
        $region48: #{tpu_custom_call.1} parent=43 // pred_fallthru
          _
        // Predicated region
        $region49: #{tpu_custom_call.1} parent=43 // pred_check
          %p357 = pneg %p230
        $region50: #{tpu_custom_call.1} parent=43 // pred_check_branch
          %359 = sbr.rel (%p357) target = $region52
        $region51: #{tpu_custom_call.1} parent=43 // pred_region
          %s360 = sand.u32 %s23, 1
          %s361 = scalar_lea.sflag [#allocation3], %s360
          %s362 = sand.u32 %s220, 1
          %s363 = smul.addr %s362, 32
          %s364 = scalar_lea.vmem [#allocation10], %s363
          %s365 = smul.u32 2, %s31
          %s367 = ssub.s32 512, 512
          %368 = vsyncadd %s361, %s367
          %s369 = smul.addr %s365, 2
          %s370 = smul.addr %s369, 128
          %s371 = scalar_lea.hbm %s8, %s370
          %s372 = sshll.u32 %s364, 4
          %s373 = int_to_ptr.vmem [resolvable:$true] %s372
          %378 = dma.hbm_to_vmem [thread:$0]  %s371, 512, %s373, %s361, 128, 128, 8
        $region52: #{tpu_custom_call.1} parent=43 // pred_fallthru
          _
      $region44: #{tpu_custom_call.1} parent=5 // pred_fallthru
        _
      %p379 = scmp.le.s32.totalorder 1, %s23
      %p380 = scmp.lt.s32.totalorder %s23, 5
      %p381 = pnand %p379, %p380
      %p382 = pneg %p381
      // Predicated region
      $region53: #{tpu_custom_call.1} parent=5 // pred_check
        _
      $region54: #{tpu_custom_call.1} parent=5 // pred_check_branch
        %384 = sbr.rel (%p381) target = $region56
      $region55: #{tpu_custom_call.1} parent=5 // pred_region
        %s385 = ssub.s32 %s23, 1
        %s386 = sand.u32 %s28, 1
        %s387 = scalar_lea.sflag [#allocation3], %s386
        %s388 = sand.u32 %s50, 1
        %s389 = smul.addr %s388, 32
        %s390 = scalar_lea.vmem [#allocation2], %s389
        // Predicated region
        $region57: #{tpu_custom_call.1} parent=55 // pred_check
          %p391 = pneg %p63
        $region58: #{tpu_custom_call.1} parent=55 // pred_check_branch
          %393 = sbr.rel (%p391) target = $region60
        $region59: #{tpu_custom_call.1} parent=55 // pred_region
          %394 = dma.done %s387, 512
        $region60: #{tpu_custom_call.1} parent=55 // pred_fallthru
          _
        // Predicated region
        $region61: #{tpu_custom_call.1} parent=55 // pred_check
          %p395 = pneg %p84
        $region62: #{tpu_custom_call.1} parent=55 // pred_check_branch
          %397 = sbr.rel (%p395) target = $region64
        $region63: #{tpu_custom_call.1} parent=55 // pred_region
          %398 = dma.done [#allocation6], 1024
        $region64: #{tpu_custom_call.1} parent=55 // pred_fallthru
          _
        // Predicated region
        $region65: #{tpu_custom_call.1} parent=55 // pred_check
          %p399 = pneg %p147
        $region66: #{tpu_custom_call.1} parent=55 // pred_check_branch
          %401 = sbr.rel (%p399) target = $region68
        $region67: #{tpu_custom_call.1} parent=55 // pred_region
          %402 = dma.done [#allocation6], 256
        $region68: #{tpu_custom_call.1} parent=55 // pred_fallthru
          _
        // Predicated region
        $region69: #{tpu_custom_call.1} parent=55 // pred_check
          %p403 = pneg %p189
        $region70: #{tpu_custom_call.1} parent=55 // pred_check_branch
          %405 = sbr.rel (%p403) target = $region72
        $region71: #{tpu_custom_call.1} parent=55 // pred_region
          %406 = dma.done [#allocation9], 256
        $region72: #{tpu_custom_call.1} parent=55 // pred_fallthru
          _
        %s407 = sand.u32 %s28, 1
        %s408 = scalar_lea.sflag [#allocation3], %s407
        %s409 = sand.u32 %s223, 1
        %s410 = smul.addr %s409, 32
        %s411 = scalar_lea.vmem [#allocation10], %s410
        // Predicated region
        $region73: #{tpu_custom_call.1} parent=55 // pred_check
          %p412 = pneg %p236
        $region74: #{tpu_custom_call.1} parent=55 // pred_check_branch
          %414 = sbr.rel (%p412) target = $region76
        $region75: #{tpu_custom_call.1} parent=55 // pred_region
          %415 = dma.done %s408, 512
        $region76: #{tpu_custom_call.1} parent=55 // pred_fallthru
          _
        %s416 = sand.u32 %s28, 1
        %s417 = scalar_lea.sflag [#allocation3], %s416
        %s418 = sand.u32 %s50, 1
        %s419 = smul.addr %s418, 32
        %s420 = scalar_lea.vmem [#allocation2], %s419
        %p421 = pneg %p63
        %p422 = pneg %p60
        %p423 = pneg %p84
        %p424 = pneg %p81
        %p425 = pneg %p105
        %p426 = pneg %p102
        %p427 = pneg %p126
        %p428 = pneg %p123
        %p429 = pneg %p147
        %p430 = pneg %p144
        %p431 = pneg %p168
        %p432 = pneg %p165
        %p433 = pneg %p189
        %p434 = pneg %p186
        %p435 = pneg %p210
        %p436 = pneg %p207
        %s437 = sand.u32 %s28, 1
        %s438 = scalar_lea.sflag [#allocation3], %s437
        %s439 = sand.u32 %s223, 1
        %s440 = smul.addr %s439, 32
        %s441 = scalar_lea.vmem [#allocation10], %s440
        %p442 = pneg %p236
        %p443 = pneg %p233
        %p444 = pneg %p264
        %p445 = pneg %p261
        %s446 = sand.u32 %s251, 1
        %s447 = scalar_lea.sflag [#allocation4], %s446
        %s448 = sand.u32 %s251, 1
        %s449 = smul.addr %s448, 32
        %s450 = scalar_lea.vmem [#allocation11], %s449
        %s451 = smul.u32 4, %s33
        %s452 = smul.u32 2, %s33
        %s453 = smul.u32 4, %s33
        %v455 = vld [vmem:[%s390] sm:$0xff]
        %v456 = vld [vmem:[%s390 + $0x8] sm:$0xff]
        %v457 = vld [vmem:[%s390 + $0x10] sm:$0xff]
        %v458 = vld [vmem:[%s390 + $0x18] sm:$0xff]
        %v463 = vcombine.high %v455, %v455
        %v464 = vcombine.high %v456, %v456
        %v465 = vcombine.high %v457, %v457
        %v466 = vcombine.high %v458, %v458
        %v471 = vcombine.low %v455, %v456
        %v472 = vcombine.low %v457, %v458
        %v473 = vcombine.low %v463, %v464
        %v474 = vcombine.low %v465, %v466
        %vm479 = vcmask 261120
        %v480 = vsel %vm479, %v471, 0.0
        %481 = vadd.xlane.f32.xlu0 %v480
        %v482 = vpop.xlane.xlu0 %481
        %v483 = vsel %vm479, %v472, 0.0
        %484 = vadd.xlane.f32.xlu0 %v483
        %v485 = vpop.xlane.xlu0 %484
        %v486 = vsel %vm479, %v473, 0.0
        %487 = vadd.xlane.f32.xlu0 %v486
        %v488 = vpop.xlane.xlu0 %487
        %v489 = vsel %vm479, %v474, 0.0
        %490 = vadd.xlane.f32.xlu0 %v489
        %v491 = vpop.xlane.xlu0 %490
        %v492 = vrcp.pop 32.0
        %v493 = vmul.f32 %v482, %v492
        %v494 = vmul.f32 %v485, %v492
        %v495 = vmul.f32 %v488, %v492
        %v496 = vmul.f32 %v491, %v492
        %v502 = vunpack.c.l.s4 839922192
        %v503 = vunpack.c.0.s8 %v502
        %v504 = vlaneseq
        %v505 = vshrl.u32 %v504, 7
        %v506 = vsub.s32 %v503, %v505
        %v507 = vrot.slane %v493, %v506
        %v509 = vunpack.c.l.s4 1985246804
        %v510 = vunpack.c.0.s8 %v509
        %v511 = vlaneseq
        %v512 = vshrl.u32 %v511, 7
        %v513 = vsub.s32 %v510, %v512
        %v514 = vrot.slane %v493, %v513
        %v516 = vunpack.c.l.s4 839922192
        %v517 = vunpack.c.0.s8 %v516
        %v518 = vlaneseq
        %v519 = vshrl.u32 %v518, 7
        %v520 = vsub.s32 %v517, %v519
        %v521 = vrot.slane %v494, %v520
        %v523 = vunpack.c.l.s4 1985246804
        %v524 = vunpack.c.0.s8 %v523
        %v525 = vlaneseq
        %v526 = vshrl.u32 %v525, 7
        %v527 = vsub.s32 %v524, %v526
        %v528 = vrot.slane %v494, %v527
        %v530 = vunpack.c.l.s4 839922192
        %v531 = vunpack.c.0.s8 %v530
        %v532 = vlaneseq
        %v533 = vshrl.u32 %v532, 7
        %v534 = vsub.s32 %v531, %v533
        %v535 = vrot.slane %v495, %v534
        %v537 = vunpack.c.l.s4 1985246804
        %v538 = vunpack.c.0.s8 %v537
        %v539 = vlaneseq
        %v540 = vshrl.u32 %v539, 7
        %v541 = vsub.s32 %v538, %v540
        %v542 = vrot.slane %v495, %v541
        %v544 = vunpack.c.l.s4 839922192
        %v545 = vunpack.c.0.s8 %v544
        %v546 = vlaneseq
        %v547 = vshrl.u32 %v546, 7
        %v548 = vsub.s32 %v545, %v547
        %v549 = vrot.slane %v496, %v548
        %v551 = vunpack.c.l.s4 1985246804
        %v552 = vunpack.c.0.s8 %v551
        %v553 = vlaneseq
        %v554 = vshrl.u32 %v553, 7
        %v555 = vsub.s32 %v552, %v554
        %v556 = vrot.slane %v496, %v555
        %v565 = vsub.f32 %v455, %v507
        %v566 = vsub.f32 %v456, %v514
        %v567 = vsub.f32 %v457, %v521
        %v568 = vsub.f32 %v458, %v528
        %v569 = vsub.f32 %v463, %v535
        %v570 = vsub.f32 %v464, %v542
        %v571 = vsub.f32 %v465, %v549
        %v572 = vsub.f32 %v466, %v556
        %v573 = vmul.f32 %v565, %v565
        %v574 = vmul.f32 %v566, %v566
        %v575 = vmul.f32 %v567, %v567
        %v576 = vmul.f32 %v568, %v568
        %v577 = vmul.f32 %v569, %v569
        %v578 = vmul.f32 %v570, %v570
        %v579 = vmul.f32 %v571, %v571
        %v580 = vmul.f32 %v572, %v572
        %v589 = vcombine.low %v573, %v574
        %v590 = vcombine.low %v575, %v576
        %v591 = vcombine.low %v577, %v578
        %v592 = vcombine.low %v579, %v580
        %v597 = vsel %vm479, %v589, 0.0
        %598 = vadd.xlane.f32.xlu0 %v597
        %v599 = vpop.xlane.xlu0 %598
        %v600 = vsel %vm479, %v590, 0.0
        %601 = vadd.xlane.f32.xlu0 %v600
        %v602 = vpop.xlane.xlu0 %601
        %v603 = vsel %vm479, %v591, 0.0
        %604 = vadd.xlane.f32.xlu0 %v603
        %v605 = vpop.xlane.xlu0 %604
        %v606 = vsel %vm479, %v592, 0.0
        %607 = vadd.xlane.f32.xlu0 %v606
        %v608 = vpop.xlane.xlu0 %607
        %v609 = vmul.f32 %v599, %v492
        %v610 = vmul.f32 %v602, %v492
        %v611 = vmul.f32 %v605, %v492
        %v612 = vmul.f32 %v608, %v492
        %v613 = vadd.f32 %v609, 1e-05
        %v614 = vadd.f32 %v610, 1e-05
        %v615 = vadd.f32 %v611, 1e-05
        %v616 = vadd.f32 %v612, 1e-05
        %v617 = vrsqrt.pop %v613
        %v618 = vrsqrt.pop %v614
        %v619 = vrsqrt.pop %v615
        %v620 = vrsqrt.pop %v616
        %v626 = vunpack.c.l.s4 839922192
        %v627 = vunpack.c.0.s8 %v626
        %v628 = vlaneseq
        %v629 = vshrl.u32 %v628, 7
        %v630 = vsub.s32 %v627, %v629
        %v631 = vrot.slane %v617, %v630
        %v633 = vunpack.c.l.s4 1985246804
        %v634 = vunpack.c.0.s8 %v633
        %v635 = vlaneseq
        %v636 = vshrl.u32 %v635, 7
        %v637 = vsub.s32 %v634, %v636
        %v638 = vrot.slane %v617, %v637
        %v640 = vunpack.c.l.s4 839922192
        %v641 = vunpack.c.0.s8 %v640
        %v642 = vlaneseq
        %v643 = vshrl.u32 %v642, 7
        %v644 = vsub.s32 %v641, %v643
        %v645 = vrot.slane %v618, %v644
        %v647 = vunpack.c.l.s4 1985246804
        %v648 = vunpack.c.0.s8 %v647
        %v649 = vlaneseq
        %v650 = vshrl.u32 %v649, 7
        %v651 = vsub.s32 %v648, %v650
        %v652 = vrot.slane %v618, %v651
        %v654 = vunpack.c.l.s4 839922192
        %v655 = vunpack.c.0.s8 %v654
        %v656 = vlaneseq
        %v657 = vshrl.u32 %v656, 7
        %v658 = vsub.s32 %v655, %v657
        %v659 = vrot.slane %v619, %v658
        %v661 = vunpack.c.l.s4 1985246804
        %v662 = vunpack.c.0.s8 %v661
        %v663 = vlaneseq
        %v664 = vshrl.u32 %v663, 7
        %v665 = vsub.s32 %v662, %v664
        %v666 = vrot.slane %v619, %v665
        %v668 = vunpack.c.l.s4 839922192
        %v669 = vunpack.c.0.s8 %v668
        %v670 = vlaneseq
        %v671 = vshrl.u32 %v670, 7
        %v672 = vsub.s32 %v669, %v671
        %v673 = vrot.slane %v620, %v672
        %v675 = vunpack.c.l.s4 1985246804
        %v676 = vunpack.c.0.s8 %v675
        %v677 = vlaneseq
        %v678 = vshrl.u32 %v677, 7
        %v679 = vsub.s32 %v676, %v678
        %v680 = vrot.slane %v620, %v679
        %v689 = vmul.f32 %v565, %v631
        %v690 = vmul.f32 %v566, %v638
        %v691 = vmul.f32 %v567, %v645
        %v692 = vmul.f32 %v568, %v652
        %v693 = vmul.f32 %v569, %v659
        %v694 = vmul.f32 %v570, %v666
        %v695 = vmul.f32 %v571, %v673
        %v696 = vmul.f32 %v572, %v680
        %v697 = vld [vmem:[%s2] sm:$0x1]
        %v699 = vlaneseq
        %v700 = vshrl.u32 %v699, 7
        %v701 = vsub.s32 0, %v700
        %v702 = vrot.slane %v697, %v701
        %v704 = vcombine.high %v702, %v702
        %v706 = vmul.f32 %v689, %v702
        %v707 = vmul.f32 %v690, %v704
        %v708 = vmul.f32 %v691, %v702
        %v709 = vmul.f32 %v692, %v704
        %v710 = vmul.f32 %v693, %v702
        %v711 = vmul.f32 %v694, %v704
        %v712 = vmul.f32 %v695, %v702
        %v713 = vmul.f32 %v696, %v704
        %v714 = vld [vmem:[%s3] sm:$0x1]
        %v716 = vlaneseq
        %v717 = vshrl.u32 %v716, 7
        %v718 = vsub.s32 0, %v717
        %v719 = vrot.slane %v714, %v718
        %v721 = vcombine.high %v719, %v719
        %v723 = vadd.f32 %v706, %v719
        %v724 = vadd.f32 %v707, %v721
        %v725 = vadd.f32 %v708, %v719
        %v726 = vadd.f32 %v709, %v721
        %v727 = vadd.f32 %v710, %v719
        %v728 = vadd.f32 %v711, %v721
        %v729 = vadd.f32 %v712, %v719
        %v730 = vadd.f32 %v713, %v721
        %v739 = vcombine.low %v723, %v724
        %v740 = vcombine.low %v725, %v726
        %v741 = vcombine.low %v727, %v728
        %v742 = vcombine.low %v729, %v730
        %v747 = vpack.c.bf16 %v740, %v739
        %v748 = vpack.c.bf16 %v742, %v741
        %v749 = vld [vmem:[#allocation7] sm:$0xf]
        %v750 = vld [vmem:[#allocation7 + $0x4] sm:$0xf]
        %v751 = vld [vmem:[#allocation7 + $0x8] sm:$0xf]
        %v752 = vld [vmem:[#allocation7 + $0xc] sm:$0xf]
        %v753 = vld [vmem:[%s5] sm:$0x1]
        %v755 = vlaneseq
        %v756 = vshrl.u32 %v755, 7
        %v757 = vsub.s32 0, %v756
        %v758 = vrot.slane %v753, %v757
        %v764 = vunpack.c.l.b16 %v749
        %v765 = vunpack.c.l.b16 %v750
        %v766 = vunpack.c.l.b16 %v751
        %v767 = vunpack.c.l.b16 %v752
        %v768 = vpack.c.b16 %v765, %v764
        %v769 = vpack.c.b16 %v767, %v766
        %v773 = vsel %vm479, %v747, 0
        %v776 = vsel %vm479, %v748, 0
        %778 = vmatprep.subr.bf16.mxu0 0
        %779 = vmatpush1.bf16.msra.mxu0 0
        %780 = vmatprep.subr.bf16.mxu0 0
        %781 = vmatpush1.bf16.msra.mxu0 0
        %782 = vmatprep.subr.bf16.mxu0 0
        %783 = vmatpush1.bf16.msra.mxu0 0
        %784 = vmatprep.subr.bf16.mxu0 0
        %785 = vmatpush1.bf16.msra.mxu0 0
        %786 = vmatprep.subr.bf16.mxu0 0
        %787 = vmatpush1.bf16.msra.mxu0 0
        %788 = vmatprep.subr.bf16.mxu0 0
        %789 = vmatpush1.bf16.msra.mxu0 0
        %790 = vmatprep.subr.bf16.mxu0 0
        %791 = vmatpush1.bf16.msra.mxu0 %v769
        %792 = vmatprep.subr.bf16.mxu0 0
        %793 = vmatpush1.bf16.msra.mxu0 %v768
        %794 = vmatprep.subr.bf16.mxu0 0
        %795 = vmatpush2.bf16.msra.mxu0 0
        %796 = vmatprep.subr.bf16.mxu0 0
        %797 = vmatpush2.bf16.msra.mxu0 0
        %798 = vmatprep.subr.bf16.mxu0 0
        %799 = vmatpush2.bf16.msra.mxu0 0
        %800 = vmatprep.subr.bf16.mxu0 0
        %801 = vmatpush2.bf16.msra.mxu0 0
        %802 = vmatprep.subr.bf16.mxu0 0
        %803 = vmatpush2.bf16.msra.mxu0 0
        %804 = vmatprep.subr.bf16.mxu0 0
        %805 = vmatpush2.bf16.msra.mxu0 0
        %806 = vmatprep.subr.bf16.mxu0 0
        %807 = vmatpush2.bf16.msra.mxu0 0
        %808 = vmatprep.subr.bf16.mxu0 0
        %809 = vmatpush2.bf16.msra.mxu0 0
        %810 = vmatprep.mubr.bf16.mxu0 0
        %811 = vmatmul.mubr.bf16.gmra.mxu0 %v773
        %v812 = vpop.f32.mrf.mxu0
        %v813 = vadd.f32 %v758, %v812
        %v814 = vpop.f32.mrf.mxu0
        %v815 = vpop.f32.mrf.mxu0
        %v816 = vadd.f32 %v758, %v815
        %v817 = vpop.f32.mrf.mxu0
        %818 = vmatprep.mubr.bf16.mxu0 0
        %819 = vmatmul.mubr.bf16.gmra.mxu0 %v776
        %v820 = vpop.f32.mrf.mxu0
        %v821 = vadd.f32 %v758, %v820
        %v822 = vpop.f32.mrf.mxu0
        %v823 = vpop.f32.mrf.mxu0
        %v824 = vadd.f32 %v758, %v823
        %v825 = vpop.f32.mrf.mxu0
        %826 = vdwg.mxu0
        %831 = vrot.lane.b32.xlu0 %v813, 120
        %v832 = vpop.permute.xlu0 %831
        %833 = vrot.lane.b32.xlu0 %v816, 120
        %v834 = vpop.permute.xlu0 %833
        %835 = vrot.lane.b32.xlu0 %v821, 120
        %v836 = vpop.permute.xlu0 %835
        %837 = vrot.lane.b32.xlu0 %v824, 120
        %v838 = vpop.permute.xlu0 %837
        %843 = vrot.lane.b32.xlu0 %v813, 112
        %v844 = vpop.permute.xlu0 %843
        %845 = vrot.lane.b32.xlu0 %v816, 112
        %v846 = vpop.permute.xlu0 %845
        %847 = vrot.lane.b32.xlu0 %v821, 112
        %v848 = vpop.permute.xlu0 %847
        %849 = vrot.lane.b32.xlu0 %v824, 112
        %v850 = vpop.permute.xlu0 %849
        %855 = vrot.lane.b32.xlu0 %v813, 104
        %v856 = vpop.permute.xlu0 %855
        %857 = vrot.lane.b32.xlu0 %v816, 104
        %v858 = vpop.permute.xlu0 %857
        %859 = vrot.lane.b32.xlu0 %v821, 104
        %v860 = vpop.permute.xlu0 %859
        %861 = vrot.lane.b32.xlu0 %v824, 104
        %v862 = vpop.permute.xlu0 %861
        %v867 = vmul.f32 %v813, 0.35355338
        %v868 = vmul.f32 %v816, 0.35355338
        %v869 = vmul.f32 %v821, 0.35355338
        %v870 = vmul.f32 %v824, 0.35355338
        %v871 = vmul.f32 %v832, 0.35355338
        %v872 = vmul.f32 %v834, 0.35355338
        %v873 = vmul.f32 %v836, 0.35355338
        %v874 = vmul.f32 %v838, 0.35355338
        %v875 = vmul.f32 %v844, 0.35355338
        %v876 = vmul.f32 %v846, 0.35355338
        %v877 = vmul.f32 %v848, 0.35355338
        %v878 = vmul.f32 %v850, 0.35355338
        %v879 = vmul.f32 %v856, 0.35355338
        %v880 = vmul.f32 %v858, 0.35355338
        %v881 = vmul.f32 %v860, 0.35355338
        %v882 = vmul.f32 %v862, 0.35355338
        %v883 = vpack.c.bf16 %v868, %v867
        %v884 = vpack.c.bf16 %v870, %v869
        %v885 = vpack.c.bf16 %v872, %v871
        %v886 = vpack.c.bf16 %v874, %v873
        %v887 = vpack.c.bf16 %v876, %v875
        %v888 = vpack.c.bf16 %v878, %v877
        %v889 = vpack.c.bf16 %v880, %v879
        %v890 = vpack.c.bf16 %v882, %v881
        %v891 = vpack.c.bf16 %v816, %v813
        %v892 = vpack.c.bf16 %v824, %v821
        %v893 = vpack.c.bf16 %v834, %v832
        %v894 = vpack.c.bf16 %v838, %v836
        %v895 = vpack.c.bf16 %v846, %v844
        %v896 = vpack.c.bf16 %v850, %v848
        %v897 = vpack.c.bf16 %v858, %v856
        %v898 = vpack.c.bf16 %v862, %v860
        %900 = vrot.lane.b32.xlu0 %v891, 96
        %v901 = vpop.permute.xlu0 %900
        %vm902 = vcmask 64512
        %v904 = vsel %vm902, %v883, 0
        %v907 = vsel %vm902, %v901, 0
        %909 = vmatprep.subr.bf16.mxu0 0
        %910 = vmatpush1.bf16.xpose.msra.mxu0 0
        %911 = vmatprep.subr.bf16.mxu0 0
        %912 = vmatpush1.bf16.xpose.msra.mxu0 0
        %913 = vmatprep.subr.bf16.mxu0 0
        %914 = vmatpush1.bf16.xpose.msra.mxu0 0
        %915 = vmatprep.subr.bf16.mxu0 0
        %916 = vmatpush1.bf16.xpose.msra.mxu0 0
        %917 = vmatprep.subr.bf16.mxu0 0
        %918 = vmatpush1.bf16.xpose.msra.mxu0 0
        %919 = vmatprep.subr.bf16.mxu0 0
        %920 = vmatpush1.bf16.xpose.msra.mxu0 0
        %921 = vmatprep.subr.bf16.mxu0 0
        %922 = vmatpush1.bf16.xpose.msra.mxu0 0
        %923 = vmatprep.subr.bf16.mxu0 0
        %924 = vmatpush1.bf16.xpose.msra.mxu0 %v907
        %925 = vmatprep.subr.bf16.mxu0 0
        %926 = vmatpush2.bf16.xpose.msra.mxu0 0
        %927 = vmatprep.subr.bf16.mxu0 0
        %928 = vmatpush2.bf16.xpose.msra.mxu0 0
        %929 = vmatprep.subr.bf16.mxu0 0
        %930 = vmatpush2.bf16.xpose.msra.mxu0 0
        %931 = vmatprep.subr.bf16.mxu0 0
        %932 = vmatpush2.bf16.xpose.msra.mxu0 0
        %933 = vmatprep.subr.bf16.mxu0 0
        %934 = vmatpush2.bf16.xpose.msra.mxu0 0
        %935 = vmatprep.subr.bf16.mxu0 0
        %936 = vmatpush2.bf16.xpose.msra.mxu0 0
        %937 = vmatprep.subr.bf16.mxu0 0
        %938 = vmatpush2.bf16.xpose.msra.mxu0 0
        %939 = vmatprep.subr.bf16.mxu0 0
        %940 = vmatpush2.bf16.xpose.msra.mxu0 0
        %941 = vmatprep.mubr.bf16.mxu0 0
        %942 = vmatmul.mubr.bf16.gmra.mxu0 %v904
        %v943 = vpop.f32.mrf.mxu0
        %v944 = vadd.f32 0.0, %v943
        %v945 = vpop.f32.mrf.mxu0
        %v946 = vpop.f32.mrf.mxu0
        %v947 = vadd.f32 0.0, %v946
        %v948 = vpop.f32.mrf.mxu0
        %949 = vdwg.mxu0
        %951 = vrot.lane.b32.xlu0 %v892, 96
        %v952 = vpop.permute.xlu0 %951
        %v954 = vsel %vm902, %v884, 0
        %v957 = vsel %vm902, %v952, 0
        %959 = vmatprep.subr.bf16.mxu0 0
        %960 = vmatpush1.bf16.xpose.msra.mxu0 0
        %961 = vmatprep.subr.bf16.mxu0 0
        %962 = vmatpush1.bf16.xpose.msra.mxu0 0
        %963 = vmatprep.subr.bf16.mxu0 0
        %964 = vmatpush1.bf16.xpose.msra.mxu0 0
        %965 = vmatprep.subr.bf16.mxu0 0
        %966 = vmatpush1.bf16.xpose.msra.mxu0 0
        %967 = vmatprep.subr.bf16.mxu0 0
        %968 = vmatpush1.bf16.xpose.msra.mxu0 0
        %969 = vmatprep.subr.bf16.mxu0 0
        %970 = vmatpush1.bf16.xpose.msra.mxu0 0
        %971 = vmatprep.subr.bf16.mxu0 0
        %972 = vmatpush1.bf16.xpose.msra.mxu0 0
        %973 = vmatprep.subr.bf16.mxu0 0
        %974 = vmatpush1.bf16.xpose.msra.mxu0 %v957
        %975 = vmatprep.subr.bf16.mxu0 0
        %976 = vmatpush2.bf16.xpose.msra.mxu0 0
        %977 = vmatprep.subr.bf16.mxu0 0
        %978 = vmatpush2.bf16.xpose.msra.mxu0 0
        %979 = vmatprep.subr.bf16.mxu0 0
        %980 = vmatpush2.bf16.xpose.msra.mxu0 0
        %981 = vmatprep.subr.bf16.mxu0 0
        %982 = vmatpush2.bf16.xpose.msra.mxu0 0
        %983 = vmatprep.subr.bf16.mxu0 0
        %984 = vmatpush2.bf16.xpose.msra.mxu0 0
        %985 = vmatprep.subr.bf16.mxu0 0
        %986 = vmatpush2.bf16.xpose.msra.mxu0 0
        %987 = vmatprep.subr.bf16.mxu0 0
        %988 = vmatpush2.bf16.xpose.msra.mxu0 0
        %989 = vmatprep.subr.bf16.mxu0 0
        %990 = vmatpush2.bf16.xpose.msra.mxu0 0
        %991 = vmatprep.mubr.bf16.mxu0 0
        %992 = vmatmul.mubr.bf16.gmra.mxu0 %v954
        %v993 = vpop.f32.mrf.mxu0
        %v994 = vadd.f32 0.0, %v993
        %v995 = vpop.f32.mrf.mxu0
        %v996 = vpop.f32.mrf.mxu0
        %v997 = vadd.f32 0.0, %v996
        %v998 = vpop.f32.mrf.mxu0
        %999 = vdwg.mxu0
        %1001 = vrot.lane.b32.xlu0 %v893, 96
        %v1002 = vpop.permute.xlu0 %1001
        %v1004 = vsel %vm902, %v885, 0
        %v1007 = vsel %vm902, %v1002, 0
        %1009 = vmatprep.subr.bf16.mxu0 0
        %1010 = vmatpush1.bf16.xpose.msra.mxu0 0
        %1011 = vmatprep.subr.bf16.mxu0 0
        %1012 = vmatpush1.bf16.xpose.msra.mxu0 0
        %1013 = vmatprep.subr.bf16.mxu0 0
        %1014 = vmatpush1.bf16.xpose.msra.mxu0 0
        %1015 = vmatprep.subr.bf16.mxu0 0
        %1016 = vmatpush1.bf16.xpose.msra.mxu0 0
        %1017 = vmatprep.subr.bf16.mxu0 0
        %1018 = vmatpush1.bf16.xpose.msra.mxu0 0
        %1019 = vmatprep.subr.bf16.mxu0 0
        %1020 = vmatpush1.bf16.xpose.msra.mxu0 0
        %1021 = vmatprep.subr.bf16.mxu0 0
        %1022 = vmatpush1.bf16.xpose.msra.mxu0 0
        %1023 = vmatprep.subr.bf16.mxu0 0
        %1024 = vmatpush1.bf16.xpose.msra.mxu0 %v1007
        %1025 = vmatprep.subr.bf16.mxu0 0
        %1026 = vmatpush2.bf16.xpose.msra.mxu0 0
        %1027 = vmatprep.subr.bf16.mxu0 0
        %1028 = vmatpush2.bf16.xpose.msra.mxu0 0
        %1029 = vmatprep.subr.bf16.mxu0 0
        %1030 = vmatpush2.bf16.xpose.msra.mxu0 0
        %1031 = vmatprep.subr.bf16.mxu0 0
        %1032 = vmatpush2.bf16.xpose.msra.mxu0 0
        %1033 = vmatprep.subr.bf16.mxu0 0
        %1034 = vmatpush2.bf16.xpose.msra.mxu0 0
        %1035 = vmatprep.subr.bf16.mxu0 0
        %1036 = vmatpush2.bf16.xpose.msra.mxu0 0
        %1037 = vmatprep.subr.bf16.mxu0 0
        %1038 = vmatpush2.bf16.xpose.msra.mxu0 0
        %1039 = vmatprep.subr.bf16.mxu0 0
        %1040 = vmatpush2.bf16.xpose.msra.mxu0 0
        %1041 = vmatprep.mubr.bf16.mxu0 0
        %1042 = vmatmul.mubr.bf16.gmra.mxu0 %v1004
        %v1043 = vpop.f32.mrf.mxu0
        %v1044 = vadd.f32 0.0, %v1043
        %v1045 = vpop.f32.mrf.mxu0
        %v1046 = vpop.f32.mrf.mxu0
        %v1047 = vadd.f32 0.0, %v1046
        %v1048 = vpop.f32.mrf.mxu0
        %1049 = vdwg.mxu0
        %1051 = vrot.lane.b32.xlu0 %v894, 96
        %v1052 = vpop.permute.xlu0 %1051
        %v1054 = vsel %vm902, %v886, 0
        %v1057 = vsel %vm902, %v1052, 0
        %1059 = vmatprep.subr.bf16.mxu0 0
        %1060 = vmatpush1.bf16.xpose.msra.mxu0 0
        %1061 = vmatprep.subr.bf16.mxu0 0
        %1062 = vmatpush1.bf16.xpose.msra.mxu0 0
        %1063 = vmatprep.subr.bf16.mxu0 0
        %1064 = vmatpush1.bf16.xpose.msra.mxu0 0
        %1065 = vmatprep.subr.bf16.mxu0 0
        %1066 = vmatpush1.bf16.xpose.msra.mxu0 0
        %1067 = vmatprep.subr.bf16.mxu0 0
        %1068 = vmatpush1.bf16.xpose.msra.mxu0 0
        %1069 = vmatprep.subr.bf16.mxu0 0
        %1070 = vmatpush1.bf16.xpose.msra.mxu0 0
        %1071 = vmatprep.subr.bf16.mxu0 0
        %1072 = vmatpush1.bf16.xpose.msra.mxu0 0
        %1073 = vmatprep.subr.bf16.mxu0 0
        %1074 = vmatpush1.bf16.xpose.msra.mxu0 %v1057
        %1075 = vmatprep.subr.bf16.mxu0 0
        %1076 = vmatpush2.bf16.xpose.msra.mxu0 0
        %1077 = vmatprep.subr.bf16.mxu0 0
        %1078 = vmatpush2.bf16.xpose.msra.mxu0 0
        %1079 = vmatprep.subr.bf16.mxu0 0
        %1080 = vmatpush2.bf16.xpose.msra.mxu0 0
        %1081 = vmatprep.subr.bf16.mxu0 0
        %1082 = vmatpush2.bf16.xpose.msra.mxu0 0
        %1083 = vmatprep.subr.bf16.mxu0 0
        %1084 = vmatpush2.bf16.xpose.msra.mxu0 0
        %1085 = vmatprep.subr.bf16.mxu0 0
        %1086 = vmatpush2.bf16.xpose.msra.mxu0 0
        %1087 = vmatprep.subr.bf16.mxu0 0
        %1088 = vmatpush2.bf16.xpose.msra.mxu0 0
        %1089 = vmatprep.subr.bf16.mxu0 0
        %1090 = vmatpush2.bf16.xpose.msra.mxu0 0
        %1091 = vmatprep.mubr.bf16.mxu0 0
        %1092 = vmatmul.mubr.bf16.gmra.mxu0 %v1054
        %v1093 = vpop.f32.mrf.mxu0
        %v1094 = vadd.f32 0.0, %v1093
        %v1095 = vpop.f32.mrf.mxu0
        %v1096 = vpop.f32.mrf.mxu0
        %v1097 = vadd.f32 0.0, %v1096
        %v1098 = vpop.f32.mrf.mxu0
        %1099 = vdwg.mxu0
        %1101 = vrot.lane.b32.xlu0 %v895, 96
        %v1102 = vpop.permute.xlu0 %1101
        %v1104 = vsel %vm902, %v887, 0
        %v1107 = vsel %vm902, %v1102, 0
        %1109 = vmatprep.subr.bf16.mxu0 0
        %1110 = vmatpush1.bf16.xpose.msra.mxu0 0
        %1111 = vmatprep.subr.bf16.mxu0 0
        %1112 = vmatpush1.bf16.xpose.msra.mxu0 0
        %1113 = vmatprep.subr.bf16.mxu0 0
        %1114 = vmatpush1.bf16.xpose.msra.mxu0 0
        %1115 = vmatprep.subr.bf16.mxu0 0
        %1116 = vmatpush1.bf16.xpose.msra.mxu0 0
        %1117 = vmatprep.subr.bf16.mxu0 0
        %1118 = vmatpush1.bf16.xpose.msra.mxu0 0
        %1119 = vmatprep.subr.bf16.mxu0 0
        %1120 = vmatpush1.bf16.xpose.msra.mxu0 0
        %1121 = vmatprep.subr.bf16.mxu0 0
        %1122 = vmatpush1.bf16.xpose.msra.mxu0 0
        %1123 = vmatprep.subr.bf16.mxu0 0
        %1124 = vmatpush1.bf16.xpose.msra.mxu0 %v1107
        %1125 = vmatprep.subr.bf16.mxu0 0
        %1126 = vmatpush2.bf16.xpose.msra.mxu0 0
        %1127 = vmatprep.subr.bf16.mxu0 0
        %1128 = vmatpush2.bf16.xpose.msra.mxu0 0
        %1129 = vmatprep.subr.bf16.mxu0 0
        %1130 = vmatpush2.bf16.xpose.msra.mxu0 0
        %1131 = vmatprep.subr.bf16.mxu0 0
        %1132 = vmatpush2.bf16.xpose.msra.mxu0 0
        %1133 = vmatprep.subr.bf16.mxu0 0
        %1134 = vmatpush2.bf16.xpose.msra.mxu0 0
        %1135 = vmatprep.subr.bf16.mxu0 0
        %1136 = vmatpush2.bf16.xpose.msra.mxu0 0
        %1137 = vmatprep.subr.bf16.mxu0 0
        %1138 = vmatpush2.bf16.xpose.msra.mxu0 0
        %1139 = vmatprep.subr.bf16.mxu0 0
        %1140 = vmatpush2.bf16.xpose.msra.mxu0 0
        %1141 = vmatprep.mubr.bf16.mxu0 0
        %1142 = vmatmul.mubr.bf16.gmra.mxu0 %v1104
        %v1143 = vpop.f32.mrf.mxu0
        %v1144 = vadd.f32 0.0, %v1143
        %v1145 = vpop.f32.mrf.mxu0
        %v1146 = vpop.f32.mrf.mxu0
        %v1147 = vadd.f32 0.0, %v1146
        %v1148 = vpop.f32.mrf.mxu0
        %1149 = vdwg.mxu0
        %1151 = vrot.lane.b32.xlu0 %v896, 96
        %v1152 = vpop.permute.xlu0 %1151
        %v1154 = vsel %vm902, %v888, 0
        %v1157 = vsel %vm902, %v1152, 0
        %1159 = vmatprep.subr.bf16.mxu0 0
        %1160 = vmatpush1.bf16.xpose.msra.mxu0 0
        %1161 = vmatprep.subr.bf16.mxu0 0
        %1162 = vmatpush1.bf16.xpose.msra.mxu0 0
        %1163 = vmatprep.subr.bf16.mxu0 0
        %1164 = vmatpush1.bf16.xpose.msra.mxu0 0
        %1165 = vmatprep.subr.bf16.mxu0 0
        %1166 = vmatpush1.bf16.xpose.msra.mxu0 0
        %1167 = vmatprep.subr.bf16.mxu0 0
        %1168 = vmatpush1.bf16.xpose.msra.mxu0 0
        %1169 = vmatprep.subr.bf16.mxu0 0
        %1170 = vmatpush1.bf16.xpose.msra.mxu0 0
        %1171 = vmatprep.subr.bf16.mxu0 0
        %1172 = vmatpush1.bf16.xpose.msra.mxu0 0
        %1173 = vmatprep.subr.bf16.mxu0 0
        %1174 = vmatpush1.bf16.xpose.msra.mxu0 %v1157
        %1175 = vmatprep.subr.bf16.mxu0 0
        %1176 = vmatpush2.bf16.xpose.msra.mxu0 0
        %1177 = vmatprep.subr.bf16.mxu0 0
        %1178 = vmatpush2.bf16.xpose.msra.mxu0 0
        %1179 = vmatprep.subr.bf16.mxu0 0
        %1180 = vmatpush2.bf16.xpose.msra.mxu0 0
        %1181 = vmatprep.subr.bf16.mxu0 0
        %1182 = vmatpush2.bf16.xpose.msra.mxu0 0
        %1183 = vmatprep.subr.bf16.mxu0 0
        %1184 = vmatpush2.bf16.xpose.msra.mxu0 0
        %1185 = vmatprep.subr.bf16.mxu0 0
        %1186 = vmatpush2.bf16.xpose.msra.mxu0 0
        %1187 = vmatprep.subr.bf16.mxu0 0
        %1188 = vmatpush2.bf16.xpose.msra.mxu0 0
        %1189 = vmatprep.subr.bf16.mxu0 0
        %1190 = vmatpush2.bf16.xpose.msra.mxu0 0
        %1191 = vmatprep.mubr.bf16.mxu0 0
        %1192 = vmatmul.mubr.bf16.gmra.mxu0 %v1154
        %v1193 = vpop.f32.mrf.mxu0
        %v1194 = vadd.f32 0.0, %v1193
        %v1195 = vpop.f32.mrf.mxu0
        %v1196 = vpop.f32.mrf.mxu0
        %v1197 = vadd.f32 0.0, %v1196
        %v1198 = vpop.f32.mrf.mxu0
        %1199 = vdwg.mxu0
        %1201 = vrot.lane.b32.xlu0 %v897, 96
        %v1202 = vpop.permute.xlu0 %1201
        %v1204 = vsel %vm902, %v889, 0
        %v1207 = vsel %vm902, %v1202, 0
        %1209 = vmatprep.subr.bf16.mxu0 0
        %1210 = vmatpush1.bf16.xpose.msra.mxu0 0
        %1211 = vmatprep.subr.bf16.mxu0 0
        %1212 = vmatpush1.bf16.xpose.msra.mxu0 0
        %1213 = vmatprep.subr.bf16.mxu0 0
        %1214 = vmatpush1.bf16.xpose.msra.mxu0 0
        %1215 = vmatprep.subr.bf16.mxu0 0
        %1216 = vmatpush1.bf16.xpose.msra.mxu0 0
        %1217 = vmatprep.subr.bf16.mxu0 0
        %1218 = vmatpush1.bf16.xpose.msra.mxu0 0
        %1219 = vmatprep.subr.bf16.mxu0 0
        %1220 = vmatpush1.bf16.xpose.msra.mxu0 0
        %1221 = vmatprep.subr.bf16.mxu0 0
        %1222 = vmatpush1.bf16.xpose.msra.mxu0 0
        %1223 = vmatprep.subr.bf16.mxu0 0
        %1224 = vmatpush1.bf16.xpose.msra.mxu0 %v1207
        %1225 = vmatprep.subr.bf16.mxu0 0
        %1226 = vmatpush2.bf16.xpose.msra.mxu0 0
        %1227 = vmatprep.subr.bf16.mxu0 0
        %1228 = vmatpush2.bf16.xpose.msra.mxu0 0
        %1229 = vmatprep.subr.bf16.mxu0 0
        %1230 = vmatpush2.bf16.xpose.msra.mxu0 0
        %1231 = vmatprep.subr.bf16.mxu0 0
        %1232 = vmatpush2.bf16.xpose.msra.mxu0 0
        %1233 = vmatprep.subr.bf16.mxu0 0
        %1234 = vmatpush2.bf16.xpose.msra.mxu0 0
        %1235 = vmatprep.subr.bf16.mxu0 0
        %1236 = vmatpush2.bf16.xpose.msra.mxu0 0
        %1237 = vmatprep.subr.bf16.mxu0 0
        %1238 = vmatpush2.bf16.xpose.msra.mxu0 0
        %1239 = vmatprep.subr.bf16.mxu0 0
        %1240 = vmatpush2.bf16.xpose.msra.mxu0 0
        %1241 = vmatprep.mubr.bf16.mxu0 0
        %1242 = vmatmul.mubr.bf16.gmra.mxu0 %v1204
        %v1243 = vpop.f32.mrf.mxu0
        %v1244 = vadd.f32 0.0, %v1243
        %v1245 = vpop.f32.mrf.mxu0
        %v1246 = vpop.f32.mrf.mxu0
        %v1247 = vadd.f32 0.0, %v1246
        %v1248 = vpop.f32.mrf.mxu0
        %1249 = vdwg.mxu0
        %1251 = vrot.lane.b32.xlu0 %v898, 96
        %v1252 = vpop.permute.xlu0 %1251
        %v1254 = vsel %vm902, %v890, 0
        %v1257 = vsel %vm902, %v1252, 0
        %1259 = vmatprep.subr.bf16.mxu0 0
        %1260 = vmatpush1.bf16.xpose.msra.mxu0 0
        %1261 = vmatprep.subr.bf16.mxu0 0
        %1262 = vmatpush1.bf16.xpose.msra.mxu0 0
        %1263 = vmatprep.subr.bf16.mxu0 0
        %1264 = vmatpush1.bf16.xpose.msra.mxu0 0
        %1265 = vmatprep.subr.bf16.mxu0 0
        %1266 = vmatpush1.bf16.xpose.msra.mxu0 0
        %1267 = vmatprep.subr.bf16.mxu0 0
        %1268 = vmatpush1.bf16.xpose.msra.mxu0 0
        %1269 = vmatprep.subr.bf16.mxu0 0
        %1270 = vmatpush1.bf16.xpose.msra.mxu0 0
        %1271 = vmatprep.subr.bf16.mxu0 0
        %1272 = vmatpush1.bf16.xpose.msra.mxu0 0
        %1273 = vmatprep.subr.bf16.mxu0 0
        %1274 = vmatpush1.bf16.xpose.msra.mxu0 %v1257
        %1275 = vmatprep.subr.bf16.mxu0 0
        %1276 = vmatpush2.bf16.xpose.msra.mxu0 0
        %1277 = vmatprep.subr.bf16.mxu0 0
        %1278 = vmatpush2.bf16.xpose.msra.mxu0 0
        %1279 = vmatprep.subr.bf16.mxu0 0
        %1280 = vmatpush2.bf16.xpose.msra.mxu0 0
        %1281 = vmatprep.subr.bf16.mxu0 0
        %1282 = vmatpush2.bf16.xpose.msra.mxu0 0
        %1283 = vmatprep.subr.bf16.mxu0 0
        %1284 = vmatpush2.bf16.xpose.msra.mxu0 0
        %1285 = vmatprep.subr.bf16.mxu0 0
        %1286 = vmatpush2.bf16.xpose.msra.mxu0 0
        %1287 = vmatprep.subr.bf16.mxu0 0
        %1288 = vmatpush2.bf16.xpose.msra.mxu0 0
        %1289 = vmatprep.subr.bf16.mxu0 0
        %1290 = vmatpush2.bf16.xpose.msra.mxu0 0
        %1291 = vmatprep.mubr.bf16.mxu0 0
        %1292 = vmatmul.mubr.bf16.gmra.mxu0 %v1254
        %v1293 = vpop.f32.mrf.mxu0
        %v1294 = vadd.f32 0.0, %v1293
        %v1295 = vpop.f32.mrf.mxu0
        %v1296 = vpop.f32.mrf.mxu0
        %v1297 = vadd.f32 0.0, %v1296
        %v1298 = vpop.f32.mrf.mxu0
        %1299 = vdwg.mxu0
        %v1300 = vld [vmem:[#allocation5] sm:$0xff]
        %v1301 = vld [vmem:[#allocation5 + $0x8] sm:$0xff]
        %v1302 = vld [vmem:[#allocation5 + $0x10] sm:$0xff]
        %v1303 = vld [vmem:[#allocation5 + $0x18] sm:$0xff]
        %v1304 = vld [vmem:[#allocation5 + $0x20] sm:$0xff]
        %v1305 = vld [vmem:[#allocation5 + $0x28] sm:$0xff]
        %v1306 = vld [vmem:[#allocation5 + $0x30] sm:$0xff]
        %v1307 = vld [vmem:[#allocation5 + $0x38] sm:$0xff]
        %v1308 = vadd.f32 %v944, %v1300
        %v1309 = vadd.f32 %v947, %v1301
        %v1310 = vadd.f32 %v994, %v1300
        %v1311 = vadd.f32 %v997, %v1301
        %v1312 = vadd.f32 %v1044, %v1302
        %v1313 = vadd.f32 %v1047, %v1303
        %v1314 = vadd.f32 %v1094, %v1302
        %v1315 = vadd.f32 %v1097, %v1303
        %v1316 = vadd.f32 %v1144, %v1304
        %v1317 = vadd.f32 %v1147, %v1305
        %v1318 = vadd.f32 %v1194, %v1304
        %v1319 = vadd.f32 %v1197, %v1305
        %v1320 = vadd.f32 %v1244, %v1306
        %v1321 = vadd.f32 %v1247, %v1307
        %v1322 = vadd.f32 %v1294, %v1306
        %v1323 = vadd.f32 %v1297, %v1307
        %v1324 = vld [vmem:[%s411] sm:$0xff]
        %v1325 = vld [vmem:[%s411 + $0x8] sm:$0xff]
        %v1326 = vld [vmem:[%s411 + $0x10] sm:$0xff]
        %v1327 = vld [vmem:[%s411 + $0x18] sm:$0xff]
        %v1328 = vadd.f32 %v1308, %v1324
        %v1329 = vadd.f32 %v1309, %v1325
        %v1330 = vadd.f32 %v1310, %v1326
        %v1331 = vadd.f32 %v1311, %v1327
        %v1332 = vadd.f32 %v1312, %v1324
        %v1333 = vadd.f32 %v1313, %v1325
        %v1334 = vadd.f32 %v1314, %v1326
        %v1335 = vadd.f32 %v1315, %v1327
        %v1336 = vadd.f32 %v1316, %v1324
        %v1337 = vadd.f32 %v1317, %v1325
        %v1338 = vadd.f32 %v1318, %v1326
        %v1339 = vadd.f32 %v1319, %v1327
        %v1340 = vadd.f32 %v1320, %v1324
        %v1341 = vadd.f32 %v1321, %v1325
        %v1342 = vadd.f32 %v1322, %v1326
        %v1343 = vadd.f32 %v1323, %v1327
        %vm1344 = vcmask 130048
        %v1345 = vsel %vm1344, %v1328, -inf
        %1346 = vmax.xlane.f32.xlu0 %v1345
        %v1347 = vpop.xlane.xlu0 %1346
        %v1348 = vsel %vm1344, %v1329, -inf
        %1349 = vmax.xlane.f32.xlu0 %v1348
        %v1350 = vpop.xlane.xlu0 %1349
        %v1351 = vsel %vm1344, %v1330, -inf
        %1352 = vmax.xlane.f32.xlu0 %v1351
        %v1353 = vpop.xlane.xlu0 %1352
        %v1354 = vsel %vm1344, %v1331, -inf
        %1355 = vmax.xlane.f32.xlu0 %v1354
        %v1356 = vpop.xlane.xlu0 %1355
        %v1357 = vsel %vm1344, %v1332, -inf
        %1358 = vmax.xlane.f32.xlu0 %v1357
        %v1359 = vpop.xlane.xlu0 %1358
        %v1360 = vsel %vm1344, %v1333, -inf
        %1361 = vmax.xlane.f32.xlu0 %v1360
        %v1362 = vpop.xlane.xlu0 %1361
        %v1363 = vsel %vm1344, %v1334, -inf
        %1364 = vmax.xlane.f32.xlu0 %v1363
        %v1365 = vpop.xlane.xlu0 %1364
        %v1366 = vsel %vm1344, %v1335, -inf
        %1367 = vmax.xlane.f32.xlu0 %v1366
        %v1368 = vpop.xlane.xlu0 %1367
        %v1369 = vsel %vm1344, %v1336, -inf
        %1370 = vmax.xlane.f32.xlu0 %v1369
        %v1371 = vpop.xlane.xlu0 %1370
        %v1372 = vsel %vm1344, %v1337, -inf
        %1373 = vmax.xlane.f32.xlu0 %v1372
        %v1374 = vpop.xlane.xlu0 %1373
        %v1375 = vsel %vm1344, %v1338, -inf
        %1376 = vmax.xlane.f32.xlu0 %v1375
        %v1377 = vpop.xlane.xlu0 %1376
        %v1378 = vsel %vm1344, %v1339, -inf
        %1379 = vmax.xlane.f32.xlu0 %v1378
        %v1380 = vpop.xlane.xlu0 %1379
        %v1381 = vsel %vm1344, %v1340, -inf
        %1382 = vmax.xlane.f32.xlu0 %v1381
        %v1383 = vpop.xlane.xlu0 %1382
        %v1384 = vsel %vm1344, %v1341, -inf
        %1385 = vmax.xlane.f32.xlu0 %v1384
        %v1386 = vpop.xlane.xlu0 %1385
        %v1387 = vsel %vm1344, %v1342, -inf
        %1388 = vmax.xlane.f32.xlu0 %v1387
        %v1389 = vpop.xlane.xlu0 %1388
        %v1390 = vsel %vm1344, %v1343, -inf
        %1391 = vmax.xlane.f32.xlu0 %v1390
        %v1392 = vpop.xlane.xlu0 %1391
        %v1393 = vsub.f32 %v1328, %v1347
        %v1394 = vsub.f32 %v1329, %v1350
        %v1395 = vsub.f32 %v1330, %v1353
        %v1396 = vsub.f32 %v1331, %v1356
        %v1397 = vsub.f32 %v1332, %v1359
        %v1398 = vsub.f32 %v1333, %v1362
        %v1399 = vsub.f32 %v1334, %v1365
        %v1400 = vsub.f32 %v1335, %v1368
        %v1401 = vsub.f32 %v1336, %v1371
        %v1402 = vsub.f32 %v1337, %v1374
        %v1403 = vsub.f32 %v1338, %v1377
        %v1404 = vsub.f32 %v1339, %v1380
        %v1405 = vsub.f32 %v1340, %v1383
        %v1406 = vsub.f32 %v1341, %v1386
        %v1407 = vsub.f32 %v1342, %v1389
        %v1408 = vsub.f32 %v1343, %v1392
        %v1409 = vmul.f32 %v1393, 1.442695
        %v1410 = vpow.pop %v1409
        %v1411 = vmul.f32 %v1394, 1.442695
        %v1412 = vpow.pop %v1411
        %v1413 = vmul.f32 %v1395, 1.442695
        %v1414 = vpow.pop %v1413
        %v1415 = vmul.f32 %v1396, 1.442695
        %v1416 = vpow.pop %v1415
        %v1417 = vmul.f32 %v1397, 1.442695
        %v1418 = vpow.pop %v1417
        %v1419 = vmul.f32 %v1398, 1.442695
        %v1420 = vpow.pop %v1419
        %v1421 = vmul.f32 %v1399, 1.442695
        %v1422 = vpow.pop %v1421
        %v1423 = vmul.f32 %v1400, 1.442695
        %v1424 = vpow.pop %v1423
        %v1425 = vmul.f32 %v1401, 1.442695
        %v1426 = vpow.pop %v1425
        %v1427 = vmul.f32 %v1402, 1.442695
        %v1428 = vpow.pop %v1427
        %v1429 = vmul.f32 %v1403, 1.442695
        %v1430 = vpow.pop %v1429
        %v1431 = vmul.f32 %v1404, 1.442695
        %v1432 = vpow.pop %v1431
        %v1433 = vmul.f32 %v1405, 1.442695
        %v1434 = vpow.pop %v1433
        %v1435 = vmul.f32 %v1406, 1.442695
        %v1436 = vpow.pop %v1435
        %v1437 = vmul.f32 %v1407, 1.442695
        %v1438 = vpow.pop %v1437
        %v1439 = vmul.f32 %v1408, 1.442695
        %v1440 = vpow.pop %v1439
        %v1441 = vsel %vm1344, %v1410, 0.0
        %1442 = vadd.xlane.f32.xlu0 %v1441
        %v1443 = vpop.xlane.xlu0 %1442
        %v1444 = vsel %vm1344, %v1412, 0.0
        %1445 = vadd.xlane.f32.xlu0 %v1444
        %v1446 = vpop.xlane.xlu0 %1445
        %v1447 = vsel %vm1344, %v1414, 0.0
        %1448 = vadd.xlane.f32.xlu0 %v1447
        %v1449 = vpop.xlane.xlu0 %1448
        %v1450 = vsel %vm1344, %v1416, 0.0
        %1451 = vadd.xlane.f32.xlu0 %v1450
        %v1452 = vpop.xlane.xlu0 %1451
        %v1453 = vsel %vm1344, %v1418, 0.0
        %1454 = vadd.xlane.f32.xlu0 %v1453
        %v1455 = vpop.xlane.xlu0 %1454
        %v1456 = vsel %vm1344, %v1420, 0.0
        %1457 = vadd.xlane.f32.xlu0 %v1456
        %v1458 = vpop.xlane.xlu0 %1457
        %v1459 = vsel %vm1344, %v1422, 0.0
        %1460 = vadd.xlane.f32.xlu0 %v1459
        %v1461 = vpop.xlane.xlu0 %1460
        %v1462 = vsel %vm1344, %v1424, 0.0
        %1463 = vadd.xlane.f32.xlu0 %v1462
        %v1464 = vpop.xlane.xlu0 %1463
        %v1465 = vsel %vm1344, %v1426, 0.0
        %1466 = vadd.xlane.f32.xlu0 %v1465
        %v1467 = vpop.xlane.xlu0 %1466
        %v1468 = vsel %vm1344, %v1428, 0.0
        %1469 = vadd.xlane.f32.xlu0 %v1468
        %v1470 = vpop.xlane.xlu0 %1469
        %v1471 = vsel %vm1344, %v1430, 0.0
        %1472 = vadd.xlane.f32.xlu0 %v1471
        %v1473 = vpop.xlane.xlu0 %1472
        %v1474 = vsel %vm1344, %v1432, 0.0
        %1475 = vadd.xlane.f32.xlu0 %v1474
        %v1476 = vpop.xlane.xlu0 %1475
        %v1477 = vsel %vm1344, %v1434, 0.0
        %1478 = vadd.xlane.f32.xlu0 %v1477
        %v1479 = vpop.xlane.xlu0 %1478
        %v1480 = vsel %vm1344, %v1436, 0.0
        %1481 = vadd.xlane.f32.xlu0 %v1480
        %v1482 = vpop.xlane.xlu0 %1481
        %v1483 = vsel %vm1344, %v1438, 0.0
        %1484 = vadd.xlane.f32.xlu0 %v1483
        %v1485 = vpop.xlane.xlu0 %1484
        %v1486 = vsel %vm1344, %v1440, 0.0
        %1487 = vadd.xlane.f32.xlu0 %v1486
        %v1488 = vpop.xlane.xlu0 %1487
        %v1489 = vrcp.pop %v1443
        %v1490 = vrcp.pop %v1446
        %v1491 = vrcp.pop %v1449
        %v1492 = vrcp.pop %v1452
        %v1493 = vrcp.pop %v1455
        %v1494 = vrcp.pop %v1458
        %v1495 = vrcp.pop %v1461
        %v1496 = vrcp.pop %v1464
        %v1497 = vrcp.pop %v1467
        %v1498 = vrcp.pop %v1470
        %v1499 = vrcp.pop %v1473
        %v1500 = vrcp.pop %v1476
        %v1501 = vrcp.pop %v1479
        %v1502 = vrcp.pop %v1482
        %v1503 = vrcp.pop %v1485
        %v1504 = vrcp.pop %v1488
        %v1505 = vmul.f32 %v1410, %v1489
        %v1506 = vmul.f32 %v1412, %v1490
        %v1507 = vmul.f32 %v1414, %v1491
        %v1508 = vmul.f32 %v1416, %v1492
        %v1509 = vmul.f32 %v1418, %v1493
        %v1510 = vmul.f32 %v1420, %v1494
        %v1511 = vmul.f32 %v1422, %v1495
        %v1512 = vmul.f32 %v1424, %v1496
        %v1513 = vmul.f32 %v1426, %v1497
        %v1514 = vmul.f32 %v1428, %v1498
        %v1515 = vmul.f32 %v1430, %v1499
        %v1516 = vmul.f32 %v1432, %v1500
        %v1517 = vmul.f32 %v1434, %v1501
        %v1518 = vmul.f32 %v1436, %v1502
        %v1519 = vmul.f32 %v1438, %v1503
        %v1520 = vmul.f32 %v1440, %v1504
        %v1521 = vpack.c.bf16 %v1506, %v1505
        %v1522 = vpack.c.bf16 %v1508, %v1507
        %v1523 = vpack.c.bf16 %v1510, %v1509
        %v1524 = vpack.c.bf16 %v1512, %v1511
        %v1525 = vpack.c.bf16 %v1514, %v1513
        %v1526 = vpack.c.bf16 %v1516, %v1515
        %v1527 = vpack.c.bf16 %v1518, %v1517
        %v1528 = vpack.c.bf16 %v1520, %v1519
        %1529 = vrot.lane.b32.xlu0 %v891, 64
        %v1530 = vpop.permute.xlu0 %1529
        %v1533 = vsel %vm1344, %v1521, 0
        %1535 = vmatprep.subr.bf16.mxu0 0
        %1536 = vmatpush1.bf16.msra.mxu0 0
        %1537 = vmatprep.subr.bf16.mxu0 0
        %1538 = vmatpush1.bf16.msra.mxu0 0
        %1539 = vmatprep.subr.bf16.mxu0 0
        %1540 = vmatpush1.bf16.msra.mxu0 0
        %1541 = vmatprep.subr.bf16.mxu0 0
        %1542 = vmatpush1.bf16.msra.mxu0 0
        %1543 = vmatprep.subr.bf16.mxu0 0
        %1544 = vmatpush1.bf16.msra.mxu0 0
        %1545 = vmatprep.subr.bf16.mxu0 0
        %1546 = vmatpush1.bf16.msra.mxu0 0
        %1547 = vmatprep.subr.bf16.mxu0 0
        %1548 = vmatpush1.bf16.msra.mxu0 0
        %1549 = vmatprep.subr.bf16.mxu0 0
        %1550 = vmatpush1.bf16.msra.mxu0 %v1530
        %1551 = vmatprep.subr.bf16.mxu0 0
        %1552 = vmatpush2.bf16.msra.mxu0 0
        %1553 = vmatprep.subr.bf16.mxu0 0
        %1554 = vmatpush2.bf16.msra.mxu0 0
        %1555 = vmatprep.subr.bf16.mxu0 0
        %1556 = vmatpush2.bf16.msra.mxu0 0
        %1557 = vmatprep.subr.bf16.mxu0 0
        %1558 = vmatpush2.bf16.msra.mxu0 0
        %1559 = vmatprep.subr.bf16.mxu0 0
        %1560 = vmatpush2.bf16.msra.mxu0 0
        %1561 = vmatprep.subr.bf16.mxu0 0
        %1562 = vmatpush2.bf16.msra.mxu0 0
        %1563 = vmatprep.subr.bf16.mxu0 0
        %1564 = vmatpush2.bf16.msra.mxu0 0
        %1565 = vmatprep.subr.bf16.mxu0 0
        %1566 = vmatpush2.bf16.msra.mxu0 0
        %1567 = vmatprep.mubr.bf16.mxu0 0
        %1568 = vmatmul.mubr.bf16.gmra.mxu0 %v1533
        %v1569 = vpop.f32.mrf.mxu0
        %v1570 = vadd.f32 0.0, %v1569
        %v1571 = vpop.f32.mrf.mxu0
        %v1572 = vpop.f32.mrf.mxu0
        %v1573 = vadd.f32 0.0, %v1572
        %v1574 = vpop.f32.mrf.mxu0
        %1575 = vdwg.mxu0
        %1576 = vrot.lane.b32.xlu0 %v892, 64
        %v1577 = vpop.permute.xlu0 %1576
        %v1580 = vsel %vm1344, %v1522, 0
        %1582 = vmatprep.subr.bf16.mxu0 0
        %1583 = vmatpush1.bf16.msra.mxu0 0
        %1584 = vmatprep.subr.bf16.mxu0 0
        %1585 = vmatpush1.bf16.msra.mxu0 0
        %1586 = vmatprep.subr.bf16.mxu0 0
        %1587 = vmatpush1.bf16.msra.mxu0 0
        %1588 = vmatprep.subr.bf16.mxu0 0
        %1589 = vmatpush1.bf16.msra.mxu0 0
        %1590 = vmatprep.subr.bf16.mxu0 0
        %1591 = vmatpush1.bf16.msra.mxu0 0
        %1592 = vmatprep.subr.bf16.mxu0 0
        %1593 = vmatpush1.bf16.msra.mxu0 0
        %1594 = vmatprep.subr.bf16.mxu0 0
        %1595 = vmatpush1.bf16.msra.mxu0 0
        %1596 = vmatprep.subr.bf16.mxu0 0
        %1597 = vmatpush1.bf16.msra.mxu0 %v1577
        %1598 = vmatprep.subr.bf16.mxu0 0
        %1599 = vmatpush2.bf16.msra.mxu0 0
        %1600 = vmatprep.subr.bf16.mxu0 0
        %1601 = vmatpush2.bf16.msra.mxu0 0
        %1602 = vmatprep.subr.bf16.mxu0 0
        %1603 = vmatpush2.bf16.msra.mxu0 0
        %1604 = vmatprep.subr.bf16.mxu0 0
        %1605 = vmatpush2.bf16.msra.mxu0 0
        %1606 = vmatprep.subr.bf16.mxu0 0
        %1607 = vmatpush2.bf16.msra.mxu0 0
        %1608 = vmatprep.subr.bf16.mxu0 0
        %1609 = vmatpush2.bf16.msra.mxu0 0
        %1610 = vmatprep.subr.bf16.mxu0 0
        %1611 = vmatpush2.bf16.msra.mxu0 0
        %1612 = vmatprep.subr.bf16.mxu0 0
        %1613 = vmatpush2.bf16.msra.mxu0 0
        %1614 = vmatprep.mubr.bf16.mxu0 0
        %1615 = vmatmul.mubr.bf16.gmra.mxu0 %v1580
        %v1616 = vpop.f32.mrf.mxu0
        %v1617 = vadd.f32 0.0, %v1616
        %v1618 = vpop.f32.mrf.mxu0
        %v1619 = vpop.f32.mrf.mxu0
        %v1620 = vadd.f32 0.0, %v1619
        %v1621 = vpop.f32.mrf.mxu0
        %1622 = vdwg.mxu0
        %1623 = vrot.lane.b32.xlu0 %v893, 64
        %v1624 = vpop.permute.xlu0 %1623
        %v1627 = vsel %vm1344, %v1523, 0
        %1629 = vmatprep.subr.bf16.mxu0 0
        %1630 = vmatpush1.bf16.msra.mxu0 0
        %1631 = vmatprep.subr.bf16.mxu0 0
        %1632 = vmatpush1.bf16.msra.mxu0 0
        %1633 = vmatprep.subr.bf16.mxu0 0
        %1634 = vmatpush1.bf16.msra.mxu0 0
        %1635 = vmatprep.subr.bf16.mxu0 0
        %1636 = vmatpush1.bf16.msra.mxu0 0
        %1637 = vmatprep.subr.bf16.mxu0 0
        %1638 = vmatpush1.bf16.msra.mxu0 0
        %1639 = vmatprep.subr.bf16.mxu0 0
        %1640 = vmatpush1.bf16.msra.mxu0 0
        %1641 = vmatprep.subr.bf16.mxu0 0
        %1642 = vmatpush1.bf16.msra.mxu0 0
        %1643 = vmatprep.subr.bf16.mxu0 0
        %1644 = vmatpush1.bf16.msra.mxu0 %v1624
        %1645 = vmatprep.subr.bf16.mxu0 0
        %1646 = vmatpush2.bf16.msra.mxu0 0
        %1647 = vmatprep.subr.bf16.mxu0 0
        %1648 = vmatpush2.bf16.msra.mxu0 0
        %1649 = vmatprep.subr.bf16.mxu0 0
        %1650 = vmatpush2.bf16.msra.mxu0 0
        %1651 = vmatprep.subr.bf16.mxu0 0
        %1652 = vmatpush2.bf16.msra.mxu0 0
        %1653 = vmatprep.subr.bf16.mxu0 0
        %1654 = vmatpush2.bf16.msra.mxu0 0
        %1655 = vmatprep.subr.bf16.mxu0 0
        %1656 = vmatpush2.bf16.msra.mxu0 0
        %1657 = vmatprep.subr.bf16.mxu0 0
        %1658 = vmatpush2.bf16.msra.mxu0 0
        %1659 = vmatprep.subr.bf16.mxu0 0
        %1660 = vmatpush2.bf16.msra.mxu0 0
        %1661 = vmatprep.mubr.bf16.mxu0 0
        %1662 = vmatmul.mubr.bf16.gmra.mxu0 %v1627
        %v1663 = vpop.f32.mrf.mxu0
        %v1664 = vadd.f32 0.0, %v1663
        %v1665 = vpop.f32.mrf.mxu0
        %v1666 = vpop.f32.mrf.mxu0
        %v1667 = vadd.f32 0.0, %v1666
        %v1668 = vpop.f32.mrf.mxu0
        %1669 = vdwg.mxu0
        %1670 = vrot.lane.b32.xlu0 %v894, 64
        %v1671 = vpop.permute.xlu0 %1670
        %v1674 = vsel %vm1344, %v1524, 0
        %1676 = vmatprep.subr.bf16.mxu0 0
        %1677 = vmatpush1.bf16.msra.mxu0 0
        %1678 = vmatprep.subr.bf16.mxu0 0
        %1679 = vmatpush1.bf16.msra.mxu0 0
        %1680 = vmatprep.subr.bf16.mxu0 0
        %1681 = vmatpush1.bf16.msra.mxu0 0
        %1682 = vmatprep.subr.bf16.mxu0 0
        %1683 = vmatpush1.bf16.msra.mxu0 0
        %1684 = vmatprep.subr.bf16.mxu0 0
        %1685 = vmatpush1.bf16.msra.mxu0 0
        %1686 = vmatprep.subr.bf16.mxu0 0
        %1687 = vmatpush1.bf16.msra.mxu0 0
        %1688 = vmatprep.subr.bf16.mxu0 0
        %1689 = vmatpush1.bf16.msra.mxu0 0
        %1690 = vmatprep.subr.bf16.mxu0 0
        %1691 = vmatpush1.bf16.msra.mxu0 %v1671
        %1692 = vmatprep.subr.bf16.mxu0 0
        %1693 = vmatpush2.bf16.msra.mxu0 0
        %1694 = vmatprep.subr.bf16.mxu0 0
        %1695 = vmatpush2.bf16.msra.mxu0 0
        %1696 = vmatprep.subr.bf16.mxu0 0
        %1697 = vmatpush2.bf16.msra.mxu0 0
        %1698 = vmatprep.subr.bf16.mxu0 0
        %1699 = vmatpush2.bf16.msra.mxu0 0
        %1700 = vmatprep.subr.bf16.mxu0 0
        %1701 = vmatpush2.bf16.msra.mxu0 0
        %1702 = vmatprep.subr.bf16.mxu0 0
        %1703 = vmatpush2.bf16.msra.mxu0 0
        %1704 = vmatprep.subr.bf16.mxu0 0
        %1705 = vmatpush2.bf16.msra.mxu0 0
        %1706 = vmatprep.subr.bf16.mxu0 0
        %1707 = vmatpush2.bf16.msra.mxu0 0
        %1708 = vmatprep.mubr.bf16.mxu0 0
        %1709 = vmatmul.mubr.bf16.gmra.mxu0 %v1674
        %v1710 = vpop.f32.mrf.mxu0
        %v1711 = vadd.f32 0.0, %v1710
        %v1712 = vpop.f32.mrf.mxu0
        %v1713 = vpop.f32.mrf.mxu0
        %v1714 = vadd.f32 0.0, %v1713
        %v1715 = vpop.f32.mrf.mxu0
        %1716 = vdwg.mxu0
        %1717 = vrot.lane.b32.xlu0 %v895, 64
        %v1718 = vpop.permute.xlu0 %1717
        %v1721 = vsel %vm1344, %v1525, 0
        %1723 = vmatprep.subr.bf16.mxu0 0
        %1724 = vmatpush1.bf16.msra.mxu0 0
        %1725 = vmatprep.subr.bf16.mxu0 0
        %1726 = vmatpush1.bf16.msra.mxu0 0
        %1727 = vmatprep.subr.bf16.mxu0 0
        %1728 = vmatpush1.bf16.msra.mxu0 0
        %1729 = vmatprep.subr.bf16.mxu0 0
        %1730 = vmatpush1.bf16.msra.mxu0 0
        %1731 = vmatprep.subr.bf16.mxu0 0
        %1732 = vmatpush1.bf16.msra.mxu0 0
        %1733 = vmatprep.subr.bf16.mxu0 0
        %1734 = vmatpush1.bf16.msra.mxu0 0
        %1735 = vmatprep.subr.bf16.mxu0 0
        %1736 = vmatpush1.bf16.msra.mxu0 0
        %1737 = vmatprep.subr.bf16.mxu0 0
        %1738 = vmatpush1.bf16.msra.mxu0 %v1718
        %1739 = vmatprep.subr.bf16.mxu0 0
        %1740 = vmatpush2.bf16.msra.mxu0 0
        %1741 = vmatprep.subr.bf16.mxu0 0
        %1742 = vmatpush2.bf16.msra.mxu0 0
        %1743 = vmatprep.subr.bf16.mxu0 0
        %1744 = vmatpush2.bf16.msra.mxu0 0
        %1745 = vmatprep.subr.bf16.mxu0 0
        %1746 = vmatpush2.bf16.msra.mxu0 0
        %1747 = vmatprep.subr.bf16.mxu0 0
        %1748 = vmatpush2.bf16.msra.mxu0 0
        %1749 = vmatprep.subr.bf16.mxu0 0
        %1750 = vmatpush2.bf16.msra.mxu0 0
        %1751 = vmatprep.subr.bf16.mxu0 0
        %1752 = vmatpush2.bf16.msra.mxu0 0
        %1753 = vmatprep.subr.bf16.mxu0 0
        %1754 = vmatpush2.bf16.msra.mxu0 0
        %1755 = vmatprep.mubr.bf16.mxu0 0
        %1756 = vmatmul.mubr.bf16.gmra.mxu0 %v1721
        %v1757 = vpop.f32.mrf.mxu0
        %v1758 = vadd.f32 0.0, %v1757
        %v1759 = vpop.f32.mrf.mxu0
        %v1760 = vpop.f32.mrf.mxu0
        %v1761 = vadd.f32 0.0, %v1760
        %v1762 = vpop.f32.mrf.mxu0
        %1763 = vdwg.mxu0
        %1764 = vrot.lane.b32.xlu0 %v896, 64
        %v1765 = vpop.permute.xlu0 %1764
        %v1768 = vsel %vm1344, %v1526, 0
        %1770 = vmatprep.subr.bf16.mxu0 0
        %1771 = vmatpush1.bf16.msra.mxu0 0
        %1772 = vmatprep.subr.bf16.mxu0 0
        %1773 = vmatpush1.bf16.msra.mxu0 0
        %1774 = vmatprep.subr.bf16.mxu0 0
        %1775 = vmatpush1.bf16.msra.mxu0 0
        %1776 = vmatprep.subr.bf16.mxu0 0
        %1777 = vmatpush1.bf16.msra.mxu0 0
        %1778 = vmatprep.subr.bf16.mxu0 0
        %1779 = vmatpush1.bf16.msra.mxu0 0
        %1780 = vmatprep.subr.bf16.mxu0 0
        %1781 = vmatpush1.bf16.msra.mxu0 0
        %1782 = vmatprep.subr.bf16.mxu0 0
        %1783 = vmatpush1.bf16.msra.mxu0 0
        %1784 = vmatprep.subr.bf16.mxu0 0
        %1785 = vmatpush1.bf16.msra.mxu0 %v1765
        %1786 = vmatprep.subr.bf16.mxu0 0
        %1787 = vmatpush2.bf16.msra.mxu0 0
        %1788 = vmatprep.subr.bf16.mxu0 0
        %1789 = vmatpush2.bf16.msra.mxu0 0
        %1790 = vmatprep.subr.bf16.mxu0 0
        %1791 = vmatpush2.bf16.msra.mxu0 0
        %1792 = vmatprep.subr.bf16.mxu0 0
        %1793 = vmatpush2.bf16.msra.mxu0 0
        %1794 = vmatprep.subr.bf16.mxu0 0
        %1795 = vmatpush2.bf16.msra.mxu0 0
        %1796 = vmatprep.subr.bf16.mxu0 0
        %1797 = vmatpush2.bf16.msra.mxu0 0
        %1798 = vmatprep.subr.bf16.mxu0 0
        %1799 = vmatpush2.bf16.msra.mxu0 0
        %1800 = vmatprep.subr.bf16.mxu0 0
        %1801 = vmatpush2.bf16.msra.mxu0 0
        %1802 = vmatprep.mubr.bf16.mxu0 0
        %1803 = vmatmul.mubr.bf16.gmra.mxu0 %v1768
        %v1804 = vpop.f32.mrf.mxu0
        %v1805 = vadd.f32 0.0, %v1804
        %v1806 = vpop.f32.mrf.mxu0
        %v1807 = vpop.f32.mrf.mxu0
        %v1808 = vadd.f32 0.0, %v1807
        %v1809 = vpop.f32.mrf.mxu0
        %1810 = vdwg.mxu0
        %1811 = vrot.lane.b32.xlu0 %v897, 64
        %v1812 = vpop.permute.xlu0 %1811
        %v1815 = vsel %vm1344, %v1527, 0
        %1817 = vmatprep.subr.bf16.mxu0 0
        %1818 = vmatpush1.bf16.msra.mxu0 0
        %1819 = vmatprep.subr.bf16.mxu0 0
        %1820 = vmatpush1.bf16.msra.mxu0 0
        %1821 = vmatprep.subr.bf16.mxu0 0
        %1822 = vmatpush1.bf16.msra.mxu0 0
        %1823 = vmatprep.subr.bf16.mxu0 0
        %1824 = vmatpush1.bf16.msra.mxu0 0
        %1825 = vmatprep.subr.bf16.mxu0 0
        %1826 = vmatpush1.bf16.msra.mxu0 0
        %1827 = vmatprep.subr.bf16.mxu0 0
        %1828 = vmatpush1.bf16.msra.mxu0 0
        %1829 = vmatprep.subr.bf16.mxu0 0
        %1830 = vmatpush1.bf16.msra.mxu0 0
        %1831 = vmatprep.subr.bf16.mxu0 0
        %1832 = vmatpush1.bf16.msra.mxu0 %v1812
        %1833 = vmatprep.subr.bf16.mxu0 0
        %1834 = vmatpush2.bf16.msra.mxu0 0
        %1835 = vmatprep.subr.bf16.mxu0 0
        %1836 = vmatpush2.bf16.msra.mxu0 0
        %1837 = vmatprep.subr.bf16.mxu0 0
        %1838 = vmatpush2.bf16.msra.mxu0 0
        %1839 = vmatprep.subr.bf16.mxu0 0
        %1840 = vmatpush2.bf16.msra.mxu0 0
        %1841 = vmatprep.subr.bf16.mxu0 0
        %1842 = vmatpush2.bf16.msra.mxu0 0
        %1843 = vmatprep.subr.bf16.mxu0 0
        %1844 = vmatpush2.bf16.msra.mxu0 0
        %1845 = vmatprep.subr.bf16.mxu0 0
        %1846 = vmatpush2.bf16.msra.mxu0 0
        %1847 = vmatprep.subr.bf16.mxu0 0
        %1848 = vmatpush2.bf16.msra.mxu0 0
        %1849 = vmatprep.mubr.bf16.mxu0 0
        %1850 = vmatmul.mubr.bf16.gmra.mxu0 %v1815
        %v1851 = vpop.f32.mrf.mxu0
        %v1852 = vadd.f32 0.0, %v1851
        %v1853 = vpop.f32.mrf.mxu0
        %v1854 = vpop.f32.mrf.mxu0
        %v1855 = vadd.f32 0.0, %v1854
        %v1856 = vpop.f32.mrf.mxu0
        %1857 = vdwg.mxu0
        %1858 = vrot.lane.b32.xlu0 %v898, 64
        %v1859 = vpop.permute.xlu0 %1858
        %v1862 = vsel %vm1344, %v1528, 0
        %1864 = vmatprep.subr.bf16.mxu0 0
        %1865 = vmatpush1.bf16.msra.mxu0 0
        %1866 = vmatprep.subr.bf16.mxu0 0
        %1867 = vmatpush1.bf16.msra.mxu0 0
        %1868 = vmatprep.subr.bf16.mxu0 0
        %1869 = vmatpush1.bf16.msra.mxu0 0
        %1870 = vmatprep.subr.bf16.mxu0 0
        %1871 = vmatpush1.bf16.msra.mxu0 0
        %1872 = vmatprep.subr.bf16.mxu0 0
        %1873 = vmatpush1.bf16.msra.mxu0 0
        %1874 = vmatprep.subr.bf16.mxu0 0
        %1875 = vmatpush1.bf16.msra.mxu0 0
        %1876 = vmatprep.subr.bf16.mxu0 0
        %1877 = vmatpush1.bf16.msra.mxu0 0
        %1878 = vmatprep.subr.bf16.mxu0 0
        %1879 = vmatpush1.bf16.msra.mxu0 %v1859
        %1880 = vmatprep.subr.bf16.mxu0 0
        %1881 = vmatpush2.bf16.msra.mxu0 0
        %1882 = vmatprep.subr.bf16.mxu0 0
        %1883 = vmatpush2.bf16.msra.mxu0 0
        %1884 = vmatprep.subr.bf16.mxu0 0
        %1885 = vmatpush2.bf16.msra.mxu0 0
        %1886 = vmatprep.subr.bf16.mxu0 0
        %1887 = vmatpush2.bf16.msra.mxu0 0
        %1888 = vmatprep.subr.bf16.mxu0 0
        %1889 = vmatpush2.bf16.msra.mxu0 0
        %1890 = vmatprep.subr.bf16.mxu0 0
        %1891 = vmatpush2.bf16.msra.mxu0 0
        %1892 = vmatprep.subr.bf16.mxu0 0
        %1893 = vmatpush2.bf16.msra.mxu0 0
        %1894 = vmatprep.subr.bf16.mxu0 0
        %1895 = vmatpush2.bf16.msra.mxu0 0
        %1896 = vmatprep.mubr.bf16.mxu0 0
        %1897 = vmatmul.mubr.bf16.gmra.mxu0 %v1862
        %v1898 = vpop.f32.mrf.mxu0
        %v1899 = vadd.f32 0.0, %v1898
        %v1900 = vpop.f32.mrf.mxu0
        %v1901 = vpop.f32.mrf.mxu0
        %v1902 = vadd.f32 0.0, %v1901
        %v1903 = vpop.f32.mrf.mxu0
        %1904 = vdwg.mxu0
        %1909 = vrot.lane.b32.xlu0 %v1664, 8
        %v1910 = vpop.permute.xlu0 %1909
        %1911 = vrot.lane.b32.xlu0 %v1667, 8
        %v1912 = vpop.permute.xlu0 %1911
        %1913 = vrot.lane.b32.xlu0 %v1711, 8
        %v1914 = vpop.permute.xlu0 %1913
        %1915 = vrot.lane.b32.xlu0 %v1714, 8
        %v1916 = vpop.permute.xlu0 %1915
        %1925 = vrot.lane.b32.xlu0 %v1758, 16
        %v1926 = vpop.permute.xlu0 %1925
        %1927 = vrot.lane.b32.xlu0 %v1761, 16
        %v1928 = vpop.permute.xlu0 %1927
        %1929 = vrot.lane.b32.xlu0 %v1805, 16
        %v1930 = vpop.permute.xlu0 %1929
        %1931 = vrot.lane.b32.xlu0 %v1808, 16
        %v1932 = vpop.permute.xlu0 %1931
        %1941 = vrot.lane.b32.xlu0 %v1852, 24
        %v1942 = vpop.permute.xlu0 %1941
        %1943 = vrot.lane.b32.xlu0 %v1855, 24
        %v1944 = vpop.permute.xlu0 %1943
        %1945 = vrot.lane.b32.xlu0 %v1899, 24
        %v1946 = vpop.permute.xlu0 %1945
        %1947 = vrot.lane.b32.xlu0 %v1902, 24
        %v1948 = vpop.permute.xlu0 %1947
        %v1953 = vsel %vm902, %v1570, %v1910
        %v1954 = vsel %vm902, %v1573, %v1912
        %v1955 = vsel %vm902, %v1617, %v1914
        %v1956 = vsel %vm902, %v1620, %v1916
        %v1957 = vsel %vm1344, %v1953, %v1926
        %v1958 = vsel %vm1344, %v1954, %v1928
        %v1959 = vsel %vm1344, %v1955, %v1930
        %v1960 = vsel %vm1344, %v1956, %v1932
        %vm1961 = vcmask 195584
        %v1962 = vsel %vm1961, %v1957, %v1942
        %v1963 = vsel %vm1961, %v1958, %v1944
        %v1964 = vsel %vm1961, %v1959, %v1946
        %v1965 = vsel %vm1961, %v1960, %v1948
        %v1966 = vpack.c.bf16 %v1963, %v1962
        %v1967 = vpack.c.bf16 %v1965, %v1964
        %v1968 = vld [vmem:[#allocation8] sm:$0xf]
        %v1969 = vld [vmem:[#allocation8 + $0x4] sm:$0xf]
        %v1970 = vld [vmem:[#allocation8 + $0x8] sm:$0xf]
        %v1971 = vld [vmem:[#allocation8 + $0xc] sm:$0xf]
        %v1972 = vld [vmem:[%s7] sm:$0x1]
        %v1974 = vlaneseq
        %v1975 = vshrl.u32 %v1974, 7
        %v1976 = vsub.s32 0, %v1975
        %v1977 = vrot.slane %v1972, %v1976
        %v1983 = vunpack.c.l.b16 %v1968
        %v1984 = vunpack.c.l.b16 %v1969
        %v1985 = vunpack.c.l.b16 %v1970
        %v1986 = vunpack.c.l.b16 %v1971
        %v1987 = vpack.c.b16 %v1984, %v1983
        %v1988 = vpack.c.b16 %v1986, %v1985
        %v1992 = vsel %vm479, %v1966, 0
        %v1995 = vsel %vm479, %v1967, 0
        %1997 = vmatprep.subr.bf16.mxu0 0
        %1998 = vmatpush1.bf16.msra.mxu0 0
        %1999 = vmatprep.subr.bf16.mxu0 0
        %2000 = vmatpush1.bf16.msra.mxu0 0
        %2001 = vmatprep.subr.bf16.mxu0 0
        %2002 = vmatpush1.bf16.msra.mxu0 0
        %2003 = vmatprep.subr.bf16.mxu0 0
        %2004 = vmatpush1.bf16.msra.mxu0 0
        %2005 = vmatprep.subr.bf16.mxu0 0
        %2006 = vmatpush1.bf16.msra.mxu0 0
        %2007 = vmatprep.subr.bf16.mxu0 0
        %2008 = vmatpush1.bf16.msra.mxu0 0
        %2009 = vmatprep.subr.bf16.mxu0 0
        %2010 = vmatpush1.bf16.msra.mxu0 %v1988
        %2011 = vmatprep.subr.bf16.mxu0 0
        %2012 = vmatpush1.bf16.msra.mxu0 %v1987
        %2013 = vmatprep.subr.bf16.mxu0 0
        %2014 = vmatpush2.bf16.msra.mxu0 0
        %2015 = vmatprep.subr.bf16.mxu0 0
        %2016 = vmatpush2.bf16.msra.mxu0 0
        %2017 = vmatprep.subr.bf16.mxu0 0
        %2018 = vmatpush2.bf16.msra.mxu0 0
        %2019 = vmatprep.subr.bf16.mxu0 0
        %2020 = vmatpush2.bf16.msra.mxu0 0
        %2021 = vmatprep.subr.bf16.mxu0 0
        %2022 = vmatpush2.bf16.msra.mxu0 0
        %2023 = vmatprep.subr.bf16.mxu0 0
        %2024 = vmatpush2.bf16.msra.mxu0 0
        %2025 = vmatprep.subr.bf16.mxu0 0
        %2026 = vmatpush2.bf16.msra.mxu0 0
        %2027 = vmatprep.subr.bf16.mxu0 0
        %2028 = vmatpush2.bf16.msra.mxu0 0
        %2029 = vmatprep.mubr.bf16.mxu0 0
        %2030 = vmatmul.mubr.bf16.gmra.mxu0 %v1992
        %v2031 = vpop.f32.mrf.mxu0
        %v2032 = vadd.f32 %v1977, %v2031
        %v2033 = vpop.f32.mrf.mxu0
        %v2034 = vpop.f32.mrf.mxu0
        %v2035 = vadd.f32 %v1977, %v2034
        %v2036 = vpop.f32.mrf.mxu0
        %2037 = vmatprep.mubr.bf16.mxu0 0
        %2038 = vmatmul.mubr.bf16.gmra.mxu0 %v1995
        %v2039 = vpop.f32.mrf.mxu0
        %v2040 = vadd.f32 %v1977, %v2039
        %v2041 = vpop.f32.mrf.mxu0
        %v2042 = vpop.f32.mrf.mxu0
        %v2043 = vadd.f32 %v1977, %v2042
        %v2044 = vpop.f32.mrf.mxu0
        %2045 = vdwg.mxu0
        %v2046 = vadd.f32 %v2032, %v471
        %v2047 = vadd.f32 %v2035, %v472
        %v2048 = vadd.f32 %v2040, %v473
        %v2049 = vadd.f32 %v2043, %v474
        %v2052 = vcombine.high %v2046, %v2046
        %v2053 = vcombine.high %v2047, %v2047
        %v2058 = vcombine.high %v2048, %v2048
        %v2059 = vcombine.high %v2049, %v2049
        %v2060 = vcombine.low %v2048, %v2048
        %v2061 = vcombine.low %v2058, %v2058
        %v2062 = vcombine.low %v2049, %v2049
        %v2063 = vcombine.low %v2059, %v2059
        %vm2068 = vcmask 1043456
        %v2069 = vsel %vm2068, %v2046, %v2060
        %v2070 = vsel %vm2068, %v2052, %v2061
        %v2071 = vsel %vm2068, %v2047, %v2062
        %v2072 = vsel %vm2068, %v2053, %v2063
        %2073 = vst.msk [vmem:[%s450] sm:$0xff] %vm479, %v2069
        %2074 = vst.msk [vmem:[%s450 + $0x8] sm:$0xff] %vm479, %v2070
        %2075 = vst.msk [vmem:[%s450 + $0x10] sm:$0xff] %vm479, %v2071
        %2076 = vst.msk [vmem:[%s450 + $0x18] sm:$0xff] %vm479, %v2072
        %s2077 = sand.u32 %s251, 1
        %s2078 = scalar_lea.sflag [#allocation4], %s2077
        %s2079 = sand.u32 %s251, 1
        %s2080 = smul.addr %s2079, 32
        %s2081 = scalar_lea.vmem [#allocation11], %s2080
        // Predicated region
        $region77: #{tpu_custom_call.1} parent=55 // pred_check
          %p2082 = pneg %p261
        $region78: #{tpu_custom_call.1} parent=55 // pred_check_branch
          %2084 = sbr.rel (%p2082) target = $region80
        $region79: #{tpu_custom_call.1} parent=55 // pred_region
          %s2085 = smul.u32 4, %s33
          %s2087 = ssub.s32 512, 512
          %2088 = vsyncadd %s2078, %s2087
          %s2089 = smul.addr %s32, 8
          %s2090 = sadd.s32 %s2085, %s2089
          %s2091 = smul.addr %s2090, 128
          %s2092 = scalar_lea.hbm %s9, %s2091
          %s2093 = sshll.u32 %s2081, 4
          %s2094 = int_to_ptr.vmem [resolvable:$true] %s2093
          %2099 = dma.vmem_to_hbm [thread:$0]  %s2094, 512, %s2092, %s2078, 128, 128, 8
        $region80: #{tpu_custom_call.1} parent=55 // pred_fallthru
          _
      $region56: #{tpu_custom_call.1} parent=5 // pred_fallthru
        _
      %p2100 = scmp.le.s32.totalorder 2, %s23
      // Predicated region
      $region81: #{tpu_custom_call.1} parent=5 // pred_check
        %p2101 = pneg %p2100
      $region82: #{tpu_custom_call.1} parent=5 // pred_check_branch
        %2103 = sbr.rel (%p2101) target = $region84
      $region83: #{tpu_custom_call.1} parent=5 // pred_region
        %s2104 = ssub.s32 %s23, 2
        // Predicated region
        $region85: #{tpu_custom_call.1} parent=83 // pred_check
          %p2105 = pneg %p267
        $region86: #{tpu_custom_call.1} parent=83 // pred_check_branch
          %2107 = sbr.rel (%p2105) target = $region88
        $region87: #{tpu_custom_call.1} parent=83 // pred_region
          %s2108 = sand.u32 %s252, 1
          %s2109 = scalar_lea.sflag [#allocation4], %s2108
          %s2110 = sand.u32 %s252, 1
          %s2111 = smul.addr %s2110, 32
          %s2112 = scalar_lea.vmem [#allocation11], %s2111
          %2113 = dma.done %s2109, 512
        $region88: #{tpu_custom_call.1} parent=83 // pred_fallthru
          _
      $region84: #{tpu_custom_call.1} parent=5 // pred_fallthru
        _
    $region6: #{tpu_custom_call.1} parent=1 // loop_footer
      %s27 = sadd.s32 1, %s23
    $region7: #{tpu_custom_call.1} parent=1 // loop_footer_branch
      %22 = sbr.rel target = $region3
    $region8: #{tpu_custom_call.1} parent=1 // loop_exit
      _
    %2114 = vsyncpa [#allocation3], 1
    %s2115 = scalar_lea.sflag [#allocation3], 1
    %2116 = vsyncpa %s2115, 1
    %2117 = vsyncpa [#allocation6], 1
    %2118 = vsyncpa [#allocation9], 1
    %2119 = vsyncpa [#allocation4], 1
    %s2120 = scalar_lea.sflag [#allocation4], 1
    %2121 = vsyncpa %s2120, 1

</llo_original>
